<compile_context>
chip_gen: v6e
topology: v6e:2x2x1
jax: 0.10.0
libtpu: 0.0.40
codegen_flags: <defaults>
</compile_context>

<pallas_src>
import jax
import jax.numpy as jnp
from jax.experimental import pallas as pl
from jax.experimental.pallas import tpu as pltpu


# ----------------------------- model dimensions -----------------------------
INPUT_SIZE = 2          # human_node_input_size (x, y)
EMBED = 32              # human_node_embedding_size
RNN = 64                # human_node_rnn_size
EDGE_RNN = 64           # human_human_edge_rnn_size
OUT_SIZE = 5            # human_node_output_size

LANE = 128              # vreg lane width
GATES = 4 * RNN         # 256

BATCH = 256             # nodes in the demo (2 grid steps of 128 rows)


# --------------------------------- kernel -----------------------------------
def human_node_rnn_kernel(pos_ref, ht_ref, hs_ref, h_ref, c_ref,
                          w_attn_ref, w_gates_ref, w_out_ref, misc_ref,
                          out_ref, hc_new_ref):
    f32 = jnp.float32
    bf16 = jnp.bfloat16

    misc = misc_ref[...]                         # (8, 256) f32 packed small params
    b_gates   = misc[0:1, :]                     # (1, 256)  b_ih + b_hh
    b_encattn = misc[1:2, 0:2 * EMBED]           # (1, 64)   [b_enc | b_attn]
    b_out     = misc[2:3, 0:LANE]                # (1, 128)  [b_out | 0]
    w_enc0    = misc[3:4, 0:2 * EMBED]           # (1, 64)   [w_enc row 0 | 0]
    w_enc1    = misc[4:5, 0:2 * EMBED]           # (1, 64)   [w_enc row 1 | 0]

    pos = pos_ref[...]                           # (tm, 2)  f32
    h = h_ref[...]                               # (tm, 64) f32
    c = c_ref[...]                               # (tm, 64) f32

    # edge_attention_embed: two K=64 bf16 MXU matmuls (temporal + spatial halves of
    # the weight slab); output lands in lanes 32:64, lanes 0:32 stay zero for enc.
    edge_pre = (jnp.dot(ht_ref[...].astype(bf16), w_attn_ref[0:EDGE_RNN, :],
                        preferred_element_type=f32)
                + jnp.dot(hs_ref[...].astype(bf16), w_attn_ref[EDGE_RNN:2 * EDGE_RNN, :],
                          preferred_element_type=f32))
    # encoder_linear (K=2): two VPU broadcast FMAs into lanes 0:32 (kept in f32).
    pre = pos[:, 0:1] * w_enc0 + pos[:, 1:2] * w_enc1 + edge_pre + b_encattn
    encedge = jnp.maximum(pre, 0.0)              # (tm, 64) f32 = [enc | edge]
    # TODO(synk): training-mode dropout (random mask + 1/(1-p) scaling) not implemented.

    # LSTM gates: two K=64 bf16 MXU matmuls against the resident [w_ih ; w_hh] slab.
    gates = (jnp.dot(encedge.astype(bf16), w_gates_ref[0:2 * EMBED, :],
                     preferred_element_type=f32)
             + jnp.dot(h.astype(bf16), w_gates_ref[2 * EMBED:2 * EMBED + RNN, :],
                       preferred_element_type=f32)
             + b_gates)                          # (tm, 256) f32

    # 128-lane-aligned gate post-processing: one sigmoid over [i|f], split only [g|o].
    if_act = jax.nn.sigmoid(gates[:, 0:2 * RNN])            # (tm, 128) = [i | f]
    go = gates[:, 2 * RNN:4 * RNN]                           # (tm, 128) = [g | o]
    i_g = if_act[:, 0:RNN]
    f_g = if_act[:, RNN:2 * RNN]
    g_g = jnp.tanh(go[:, 0:RNN])
    o_g = jax.nn.sigmoid(go[:, RNN:2 * RNN])

    c_new = f_g * c + i_g * g_g
    h_new = o_g * jnp.tanh(c_new)

    # output_linear, zero-padded to 128 lanes -> unmasked lane-dense store.
    out_ref[...] = (jnp.dot(h_new.astype(bf16), w_out_ref[...],
                            preferred_element_type=f32) + b_out)
    # packed recurrent state [c_new | h_new]: two sliced stores, no lane-concat.
    hc_new_ref[:, 0:RNN] = c_new
    hc_new_ref[:, RNN:2 * RNN] = h_new


# -------------------------------- wrapper ------------------------------------
def human_node_rnn_forward(pos, h_temporal, h_spatial_other, h, c, packed):
    w_attn, w_gates, w_out_pad, misc = packed
    n = pos.shape[0]

    # Row tiling: multiple of 8, aim for ~2 large grid steps so v7x's two TCs both
    # get work while single-TC v5e/v6e pay only one extra ~0.35us step; pad n
    # instead of the old tm = n fallback.
    tm = max(8, min(512, -(-n // 2)))
    tm = -(-tm // 8) * 8
    n_pad = -(-n // tm) * tm
    grid = (n_pad // tm,)

    def pad_rows(x):
        return x if n_pad == n else jnp.pad(x, ((0, n_pad - n), (0, 0)))

    pos_p, ht_p, hs_p, h_p, c_p = map(
        pad_rows, (pos, h_temporal, h_spatial_other, h, c))

    def rows(width):
        return pl.BlockSpec((tm, width), lambda i: (i, 0))

    def whole(shape):
        return pl.BlockSpec(shape, lambda i: (0, 0))      # resident across grid steps

    out_pad, hc_new = pl.pallas_call(
        human_node_rnn_kernel,
        out_shape=(
            jax.ShapeDtypeStruct((n_pad, LANE), jnp.float32),     # padded logits
            jax.ShapeDtypeStruct((n_pad, 2 * RNN), jnp.float32),  # [c_new | h_new]
        ),
        grid_spec=pltpu.PrefetchScalarGridSpec(
            num_scalar_prefetch=0,
            grid=grid,
            in_specs=[
                rows(INPUT_SIZE),                     # pos
                rows(EDGE_RNN),                       # h_temporal
                rows(EDGE_RNN),                       # h_spatial_other
                rows(RNN),                            # h
                rows(RNN),                            # c
                whole((2 * EDGE_RNN, 2 * EMBED)),     # w_attn slab (bf16)
                whole((2 * EMBED + RNN, GATES)),      # [w_ih ; w_hh] slab (bf16)
                whole((RNN, LANE)),                   # w_out padded slab (bf16)
                whole((8, GATES)),                    # misc f32 slab
            ],
            out_specs=(rows(LANE), rows(2 * RNN)),
        ),
        compiler_params=pltpu.CompilerParams(
            dimension_semantics=("parallel",)),       # node-chunk axis split across TCs
    )(pos_p, ht_p, hs_p, h_p, c_p, w_attn, w_gates, w_out_pad, misc)

    out = out_pad[:n, :OUT_SIZE]
    c_new = hc_new[:n, :RNN]
    h_new = hc_new[:n, RNN:]
    return out, h_new, c_new


# ------------------------------- parameters ----------------------------------
def init_params(key):
    """Raw parameters (already transposed to [in, out]); b_ih + b_hh folded."""
    ks = jax.random.split(key, 9)
    s = 0.1
    return dict(
        w_enc=s * jax.random.normal(ks[0], (INPUT_SIZE, EMBED), jnp.float32),
        b_enc=s * jax.random.normal(ks[1], (EMBED,), jnp.float32),
        w_attn=s * jax.random.normal(ks[2], (2 * EDGE_RNN, EMBED), jnp.float32),
        b_attn=s * jax.random.normal(ks[3], (EMBED,), jnp.float32),
        w_ih=s * jax.random.normal(ks[4], (2 * EMBED, GATES), jnp.float32),
        w_hh=s * jax.random.normal(ks[5], (RNN, GATES), jnp.float32),
        b_gates=s * jax.random.normal(ks[6], (GATES,), jnp.float32),
        w_out=s * jax.random.normal(ks[7], (RNN, OUT_SIZE), jnp.float32),
        b_out=s * jax.random.normal(ks[8], (OUT_SIZE,), jnp.float32),
    )


def pack_params(raw):
    """Pack the 9 raw tensors into 4 lane-aligned resident slabs (weights in bf16)."""
    # edge_attention_embed: rows 0:64 act on h_temporal, rows 64:128 on h_spatial;
    # output columns 32:64 (columns 0:32 reserved for the encoder output lanes).
    w_attn = jnp.zeros((2 * EDGE_RNN, 2 * EMBED), jnp.float32)
    w_attn = w_attn.at[:, EMBED:].set(raw["w_attn"])
    # LSTM gate weights stacked: rows 0:64 = w_ih (acts on [enc|edge]), rows 64:128 = w_hh.
    w_gates = jnp.concatenate([raw["w_ih"], raw["w_hh"]], axis=0)      # (128, 256)
    # output_linear weight zero-padded to 128 output lanes (lane-dense store).
    w_out_pad = (jnp.zeros((RNN, LANE), jnp.float32)
                 .at[:, :OUT_SIZE].set(raw["w_out"]))
    # misc slab (f32): biases + the K=2 encoder weight rows.
    misc = jnp.zeros((8, GATES), jnp.float32)
    misc = misc.at[0, :].set(raw["b_gates"])
    misc = misc.at[1, :EMBED].set(raw["b_enc"])
    misc = misc.at[1, EMBED:2 * EMBED].set(raw["b_attn"])
    misc = misc.at[2, :OUT_SIZE].set(raw["b_out"])
    misc = misc.at[3, :EMBED].set(raw["w_enc"][0])
    misc = misc.at[4, :EMBED].set(raw["w_enc"][1])
    return (w_attn.astype(jnp.bfloat16),
            w_gates.astype(jnp.bfloat16),
            w_out_pad.astype(jnp.bfloat16),
            misc)


# ------------------------------- reference -----------------------------------
def reference_forward(pos, h_temporal, h_spatial_other, h, c, raw):
    """Pure-JAX reference matching the PyTorch forward (eval mode), f32 HIGHEST."""
    hp = jax.lax.Precision.HIGHEST
    enc = jax.nn.relu(jnp.dot(pos, raw["w_enc"], precision=hp) + raw["b_enc"])
    h_edges = jnp.concatenate([h_temporal, h_spatial_other], axis=1)
    edge = jax.nn.relu(jnp.dot(h_edges, raw["w_attn"], precision=hp) + raw["b_attn"])
    concat_encoded = jnp.concatenate([enc, edge], axis=1)
    gates = (jnp.dot(concat_encoded, raw["w_ih"], precision=hp)
             + jnp.dot(h, raw["w_hh"], precision=hp) + raw["b_gates"])
    i_g = jax.nn.sigmoid(gates[:, 0 * RNN:1 * RNN])
    f_g = jax.nn.sigmoid(gates[:, 1 * RNN:2 * RNN])
    g_g = jnp.tanh(gates[:, 2 * RNN:3 * RNN])
    o_g = jax.nn.sigmoid(gates[:, 3 * RNN:4 * RNN])
    c_new = f_g * c + i_g * g_g
    h_new = o_g * jnp.tanh(c_new)
    out = jnp.dot(h_new, raw["w_out"], precision=hp) + raw["b_out"]
    return out, h_new, c_new


# ---------------------------------- main --------------------------------------
if __name__ == "__main__":
    key = jax.random.PRNGKey(0)
    k_pos, k_ht, k_hs, k_h, k_c, k_params = jax.random.split(key, 6)

    pos = jax.random.normal(k_pos, (BATCH, INPUT_SIZE), jnp.float32)
    h_temporal = jax.random.normal(k_ht, (BATCH, EDGE_RNN), jnp.float32)
    h_spatial_other = jax.random.normal(k_hs, (BATCH, EDGE_RNN), jnp.float32)
    h = jax.random.normal(k_h, (BATCH, RNN), jnp.float32)
    c = jax.random.normal(k_c, (BATCH, RNN), jnp.float32)

    raw = init_params(k_params)
    packed = pack_params(raw)

    fwd = jax.jit(human_node_rnn_forward)
    out, h_new, c_new = fwd(pos, h_temporal, h_spatial_other, h, c, packed)
    jax.block_until_ready((out, h_new, c_new))

    # Sanity check against the pure-JAX f32 reference. Tolerance is set for bf16
    # MXU operands (f32 accumulation); observed error is ~1e-2 worst case.
    ref_out, ref_h, ref_c = reference_forward(
        pos, h_temporal, h_spatial_other, h, c, raw)
    assert jnp.allclose(out, ref_out, atol=5e-2, rtol=5e-2), \
        float(jnp.max(jnp.abs(out - ref_out)))
    assert jnp.allclose(h_new, ref_h, atol=5e-2, rtol=5e-2), \
        float(jnp.max(jnp.abs(h_new - ref_h)))
    assert jnp.allclose(c_new, ref_c, atol=5e-2, rtol=5e-2), \
        float(jnp.max(jnp.abs(c_new - ref_c)))

    print("KERNEL_OK")
</pallas_src>

<mosaic_0001>
module attributes {stable_mosaic.version = 11 : i64} {
  func.func @human_node_rnn_kernel(%arg0: i32, %arg1: memref<128x2xf32, #tpu.memory_space<vmem>>, %arg2: memref<128x64xf32, #tpu.memory_space<vmem>>, %arg3: memref<128x64xf32, #tpu.memory_space<vmem>>, %arg4: memref<128x64xf32, #tpu.memory_space<vmem>>, %arg5: memref<128x64xf32, #tpu.memory_space<vmem>>, %arg6: memref<128x64xbf16, #tpu.memory_space<vmem>>, %arg7: memref<128x256xbf16, #tpu.memory_space<vmem>>, %arg8: memref<64x128xbf16, #tpu.memory_space<vmem>>, %arg9: memref<8x256xf32, #tpu.memory_space<vmem>>, %arg10: memref<128x128xf32, #tpu.memory_space<vmem>>, %arg11: memref<128x128xf32, #tpu.memory_space<vmem>>) attributes {dimension_semantics = [#tpu.dimension_semantics<parallel>], iteration_bounds = array<i64: 2>, scalar_prefetch = 0 : i64, scratch_operands = 0 : i64, tpu.core_type = #tpu.core_type<tc>, window_params = [{transform_indices = @transform_0, window_bounds = array<i64: 128, 2>}, {transform_indices = @transform_1, window_bounds = array<i64: 128, 64>}, {transform_indices = @transform_2, window_bounds = array<i64: 128, 64>}, {transform_indices = @transform_3, window_bounds = array<i64: 128, 64>}, {transform_indices = @transform_4, window_bounds = array<i64: 128, 64>}, {pipeline_mode = #tpu.pipeline_mode<synchronous>, transform_indices = @transform_5, window_bounds = array<i64: 128, 64>}, {pipeline_mode = #tpu.pipeline_mode<synchronous>, transform_indices = @transform_6, window_bounds = array<i64: 128, 256>}, {pipeline_mode = #tpu.pipeline_mode<synchronous>, transform_indices = @transform_7, window_bounds = array<i64: 64, 128>}, {pipeline_mode = #tpu.pipeline_mode<synchronous>, transform_indices = @transform_8, window_bounds = array<i64: 8, 256>}, {transform_indices = @transform_9, window_bounds = array<i64: 128, 128>}, {transform_indices = @transform_10, window_bounds = array<i64: 128, 128>}]} {
    %c0 = arith.constant 0 : index
    %c0_0 = arith.constant 0 : index
    %0 = vector.load %arg9[%c0, %c0_0] : memref<8x256xf32, #tpu.memory_space<vmem>>, vector<8x256xf32>
    %1 = vector.extract_strided_slice %0 {offsets = [0, 0], sizes = [1, 256], strides = [1, 1]} : vector<8x256xf32> to vector<1x256xf32>
    %2 = vector.extract_strided_slice %0 {offsets = [1, 0], sizes = [1, 64], strides = [1, 1]} : vector<8x256xf32> to vector<1x64xf32>
    %3 = vector.extract_strided_slice %0 {offsets = [2, 0], sizes = [1, 128], strides = [1, 1]} : vector<8x256xf32> to vector<1x128xf32>
    %4 = vector.extract_strided_slice %0 {offsets = [3, 0], sizes = [1, 64], strides = [1, 1]} : vector<8x256xf32> to vector<1x64xf32>
    %5 = vector.extract_strided_slice %0 {offsets = [4, 0], sizes = [1, 64], strides = [1, 1]} : vector<8x256xf32> to vector<1x64xf32>
    %c0_1 = arith.constant 0 : index
    %c0_2 = arith.constant 0 : index
    %6 = vector.load %arg1[%c0_1, %c0_2] : memref<128x2xf32, #tpu.memory_space<vmem>>, vector<128x2xf32>
    %c0_3 = arith.constant 0 : index
    %c0_4 = arith.constant 0 : index
    %7 = vector.load %arg4[%c0_3, %c0_4] : memref<128x64xf32, #tpu.memory_space<vmem>>, vector<128x64xf32>
    %c0_5 = arith.constant 0 : index
    %c0_6 = arith.constant 0 : index
    %8 = vector.load %arg5[%c0_5, %c0_6] : memref<128x64xf32, #tpu.memory_space<vmem>>, vector<128x64xf32>
    %c0_7 = arith.constant 0 : index
    %c0_8 = arith.constant 0 : index
    %9 = vector.load %arg2[%c0_7, %c0_8] : memref<128x64xf32, #tpu.memory_space<vmem>>, vector<128x64xf32>
    %10 = arith.truncf %9 : vector<128x64xf32> to vector<128x64xbf16>
    %c0_9 = arith.constant 0 : index
    %c0_10 = arith.constant 0 : index
    %11 = vector.load %arg6[%c0_9, %c0_10] : memref<128x64xbf16, #tpu.memory_space<vmem>>, vector<64x64xbf16>
    %cst = arith.constant dense<0.000000e+00> : vector<128x64xf32>
    %12 = tpu.matmul %10, %11, %cst {dimension_numbers = #tpu.dot_dimension_numbers<[1], [0], [0], [1], [0, 0, 1, 1], [], []>} : vector<128x64xbf16>, vector<64x64xbf16>, vector<128x64xf32> -> vector<128x64xf32>
    %c0_11 = arith.constant 0 : index
    %c0_12 = arith.constant 0 : index
    %13 = vector.load %arg3[%c0_11, %c0_12] : memref<128x64xf32, #tpu.memory_space<vmem>>, vector<128x64xf32>
    %14 = arith.truncf %13 : vector<128x64xf32> to vector<128x64xbf16>
    %c64 = arith.constant 64 : index
    %c0_13 = arith.constant 0 : index
    %15 = vector.load %arg6[%c64, %c0_13] : memref<128x64xbf16, #tpu.memory_space<vmem>>, vector<64x64xbf16>
    %cst_14 = arith.constant dense<0.000000e+00> : vector<128x64xf32>
    %16 = tpu.matmul %14, %15, %cst_14 {dimension_numbers = #tpu.dot_dimension_numbers<[1], [0], [0], [1], [0, 0, 1, 1], [], []>} : vector<128x64xbf16>, vector<64x64xbf16>, vector<128x64xf32> -> vector<128x64xf32>
    %17 = arith.addf %12, %16 : vector<128x64xf32>
    %18 = vector.extract_strided_slice %6 {offsets = [0, 0], sizes = [128, 1], strides = [1, 1]} : vector<128x2xf32> to vector<128x1xf32>
    %19 = vector.broadcast %18 : vector<128x1xf32> to vector<128x64xf32>
    %20 = vector.broadcast %4 : vector<1x64xf32> to vector<128x64xf32>
    %21 = arith.mulf %19, %20 : vector<128x64xf32>
    %22 = vector.extract_strided_slice %6 {offsets = [0, 1], sizes = [128, 1], strides = [1, 1]} : vector<128x2xf32> to vector<128x1xf32>
    %23 = vector.broadcast %22 : vector<128x1xf32> to vector<128x64xf32>
    %24 = vector.broadcast %5 : vector<1x64xf32> to vector<128x64xf32>
    %25 = arith.mulf %23, %24 : vector<128x64xf32>
    %26 = arith.addf %21, %25 : vector<128x64xf32>
    %27 = arith.addf %26, %17 : vector<128x64xf32>
    %28 = vector.broadcast %2 : vector<1x64xf32> to vector<128x64xf32>
    %29 = arith.addf %27, %28 : vector<128x64xf32>
    %cst_15 = arith.constant 0.000000e+00 : f32
    %30 = vector.broadcast %cst_15 : f32 to vector<128x64xf32>
    %31 = arith.maximumf %29, %30 : vector<128x64xf32>
    %32 = arith.truncf %31 : vector<128x64xf32> to vector<128x64xbf16>
    %c0_16 = arith.constant 0 : index
    %c0_17 = arith.constant 0 : index
    %33 = vector.load %arg7[%c0_16, %c0_17] : memref<128x256xbf16, #tpu.memory_space<vmem>>, vector<64x256xbf16>
    %cst_18 = arith.constant dense<0.000000e+00> : vector<128x256xf32>
    %34 = tpu.matmul %32, %33, %cst_18 {dimension_numbers = #tpu.dot_dimension_numbers<[1], [0], [0], [1], [0, 0, 1, 1], [], []>} : vector<128x64xbf16>, vector<64x256xbf16>, vector<128x256xf32> -> vector<128x256xf32>
    %35 = arith.truncf %7 : vector<128x64xf32> to vector<128x64xbf16>
    %c64_19 = arith.constant 64 : index
    %c0_20 = arith.constant 0 : index
    %36 = vector.load %arg7[%c64_19, %c0_20] : memref<128x256xbf16, #tpu.memory_space<vmem>>, vector<64x256xbf16>
    %cst_21 = arith.constant dense<0.000000e+00> : vector<128x256xf32>
    %37 = tpu.matmul %35, %36, %cst_21 {dimension_numbers = #tpu.dot_dimension_numbers<[1], [0], [0], [1], [0, 0, 1, 1], [], []>} : vector<128x64xbf16>, vector<64x256xbf16>, vector<128x256xf32> -> vector<128x256xf32>
    %38 = arith.addf %34, %37 : vector<128x256xf32>
    %39 = vector.broadcast %1 : vector<1x256xf32> to vector<128x256xf32>
    %40 = arith.addf %38, %39 : vector<128x256xf32>
    %41 = vector.extract_strided_slice %40 {offsets = [0, 0], sizes = [128, 128], strides = [1, 1]} : vector<128x256xf32> to vector<128x128xf32>
    %42 = arith.negf %41 : vector<128x128xf32>
    %43 = math.exp %42 : vector<128x128xf32>
    %cst_22 = arith.constant 1.000000e+00 : f32
    %44 = vector.broadcast %cst_22 : f32 to vector<128x128xf32>
    %45 = arith.addf %44, %43 : vector<128x128xf32>
    %46 = arith.divf %44, %45 : vector<128x128xf32>
    %47 = vector.extract_strided_slice %40 {offsets = [0, 128], sizes = [128, 128], strides = [1, 1]} : vector<128x256xf32> to vector<128x128xf32>
    %48 = vector.extract_strided_slice %46 {offsets = [0, 0], sizes = [128, 64], strides = [1, 1]} : vector<128x128xf32> to vector<128x64xf32>
    %49 = vector.extract_strided_slice %46 {offsets = [0, 64], sizes = [128, 64], strides = [1, 1]} : vector<128x128xf32> to vector<128x64xf32>
    %50 = vector.extract_strided_slice %47 {offsets = [0, 0], sizes = [128, 64], strides = [1, 1]} : vector<128x128xf32> to vector<128x64xf32>
    %51 = math.tanh %50 : vector<128x64xf32>
    %52 = vector.extract_strided_slice %47 {offsets = [0, 64], sizes = [128, 64], strides = [1, 1]} : vector<128x128xf32> to vector<128x64xf32>
    %53 = arith.negf %52 : vector<128x64xf32>
    %54 = math.exp %53 : vector<128x64xf32>
    %cst_23 = arith.constant 1.000000e+00 : f32
    %55 = vector.broadcast %cst_23 : f32 to vector<128x64xf32>
    %56 = arith.addf %55, %54 : vector<128x64xf32>
    %57 = arith.divf %55, %56 : vector<128x64xf32>
    %58 = arith.mulf %49, %8 : vector<128x64xf32>
    %59 = arith.mulf %48, %51 : vector<128x64xf32>
    %60 = arith.addf %58, %59 : vector<128x64xf32>
    %61 = math.tanh %60 : vector<128x64xf32>
    %62 = arith.mulf %57, %61 : vector<128x64xf32>
    %63 = arith.truncf %62 : vector<128x64xf32> to vector<128x64xbf16>
    %c0_24 = arith.constant 0 : index
    %c0_25 = arith.constant 0 : index
    %64 = vector.load %arg8[%c0_24, %c0_25] : memref<64x128xbf16, #tpu.memory_space<vmem>>, vector<64x128xbf16>
    %cst_26 = arith.constant dense<0.000000e+00> : vector<128x128xf32>
    %65 = tpu.matmul %63, %64, %cst_26 {dimension_numbers = #tpu.dot_dimension_numbers<[1], [0], [0], [1], [0, 0, 1, 1], [], []>} : vector<128x64xbf16>, vector<64x128xbf16>, vector<128x128xf32> -> vector<128x128xf32>
    %66 = vector.broadcast %3 : vector<1x128xf32> to vector<128x128xf32>
    %67 = arith.addf %65, %66 : vector<128x128xf32>
    %c0_27 = arith.constant 0 : index
    %c0_28 = arith.constant 0 : index
    %68 = vector.load %arg10[%c0_27, %c0_28] : memref<128x128xf32, #tpu.memory_space<vmem>>, vector<128x128xf32>
    tpu.vector_store %arg10[%c0_27, %c0_28], %67 {strides = array<i32>} : memref<128x128xf32, #tpu.memory_space<vmem>>, vector<128x128xf32>,
    %c0_29 = arith.constant 0 : index
    %c0_30 = arith.constant 0 : index
    %69 = vector.load %arg11[%c0_29, %c0_30] : memref<128x128xf32, #tpu.memory_space<vmem>>, vector<128x64xf32>
    tpu.vector_store %arg11[%c0_29, %c0_30], %60 {strides = array<i32>} : memref<128x128xf32, #tpu.memory_space<vmem>>, vector<128x64xf32>,
    %c0_31 = arith.constant 0 : index
    %c64_32 = arith.constant 64 : index
    %70 = vector.load %arg11[%c0_31, %c64_32] : memref<128x128xf32, #tpu.memory_space<vmem>>, vector<128x64xf32>
    tpu.vector_store %arg11[%c0_31, %c64_32], %62 {strides = array<i32>} : memref<128x128xf32, #tpu.memory_space<vmem>>, vector<128x64xf32>,
    return
  }
  func.func @transform_0(%arg0: i32) -> (i32, i32) {
    %c0_i32 = arith.constant 0 : i32
    %c0_i32_0 = arith.constant 0 : i32
    return %arg0, %c0_i32 : i32, i32
  }
  func.func @transform_1(%arg0: i32) -> (i32, i32) {
    %c0_i32 = arith.constant 0 : i32
    %c0_i32_0 = arith.constant 0 : i32
    return %arg0, %c0_i32 : i32, i32
  }
  func.func @transform_2(%arg0: i32) -> (i32, i32) {
    %c0_i32 = arith.constant 0 : i32
    %c0_i32_0 = arith.constant 0 : i32
    return %arg0, %c0_i32 : i32, i32
  }
  func.func @transform_3(%arg0: i32) -> (i32, i32) {
    %c0_i32 = arith.constant 0 : i32
    %c0_i32_0 = arith.constant 0 : i32
    return %arg0, %c0_i32 : i32, i32
  }
  func.func @transform_4(%arg0: i32) -> (i32, i32) {
    %c0_i32 = arith.constant 0 : i32
    %c0_i32_0 = arith.constant 0 : i32
    return %arg0, %c0_i32 : i32, i32
  }
  func.func @transform_5(%arg0: i32) -> (i32, i32) {
    %c0_i32 = arith.constant 0 : i32
    %c0_i32_0 = arith.constant 0 : i32
    %c0_i32_1 = arith.constant 0 : i32
    return %c0_i32, %c0_i32_0 : i32, i32
  }
  func.func @transform_6(%arg0: i32) -> (i32, i32) {
    %c0_i32 = arith.constant 0 : i32
    %c0_i32_0 = arith.constant 0 : i32
    %c0_i32_1 = arith.constant 0 : i32
    return %c0_i32, %c0_i32_0 : i32, i32
  }
  func.func @transform_7(%arg0: i32) -> (i32, i32) {
    %c0_i32 = arith.constant 0 : i32
    %c0_i32_0 = arith.constant 0 : i32
    %c0_i32_1 = arith.constant 0 : i32
    return %c0_i32, %c0_i32_0 : i32, i32
  }
  func.func @transform_8(%arg0: i32) -> (i32, i32) {
    %c0_i32 = arith.constant 0 : i32
    %c0_i32_0 = arith.constant 0 : i32
    %c0_i32_1 = arith.constant 0 : i32
    return %c0_i32, %c0_i32_0 : i32, i32
  }
  func.func @transform_9(%arg0: i32) -> (i32, i32) {
    %c0_i32 = arith.constant 0 : i32
    %c0_i32_0 = arith.constant 0 : i32
    return %arg0, %c0_i32 : i32, i32
  }
  func.func @transform_10(%arg0: i32) -> (i32, i32) {
    %c0_i32 = arith.constant 0 : i32
    %c0_i32_0 = arith.constant 0 : i32
    return %arg0, %c0_i32 : i32, i32
  }
}

</mosaic_0001>

<llo_original>
// kernel: human_node_rnn_forward.1
$region0: #{human_node_rnn_forward.1}
  #allocation0 [shape = 'u32[]', space=smem, size = 0x4, offset = 0x4, fixed_abs, tag = 'smem constant byte address 0x4 - core index']
  #allocation1 [shape = 'u32[144,128]{1,0:T(1,128)}', space=vmem, size = 0x12000, scoped, tag = 'internal scratch']
  %s0 = inlined_call_operand.vmem [shape: f32[256,2], index: 0, kind: input, shape index: {}]
  %s1 = inlined_call_operand.vmem [shape: f32[256,64], index: 1, kind: input, shape index: {}]
  %s2 = inlined_call_operand.vmem [shape: f32[256,64], index: 2, kind: input, shape index: {}]
  %s3 = inlined_call_operand.vmem [shape: f32[256,64], index: 3, kind: input, shape index: {}]
  %s4 = inlined_call_operand.vmem [shape: f32[256,64], index: 4, kind: input, shape index: {}]
  %s5 = inlined_call_operand.vmem [shape: bf16[128,64], index: 5, kind: input, shape index: {}]
  %s6 = inlined_call_operand.vmem [shape: bf16[128,256], index: 6, kind: input, shape index: {}]
  %s7 = inlined_call_operand.vmem [shape: bf16[64,128], index: 7, kind: input, shape index: {}]
  %s8 = inlined_call_operand.vmem [shape: f32[8,256], index: 8, kind: input, shape index: {}]
  %s9 = inlined_call_operand.vmem [shape: f32[256,128], index: 9, kind: output, shape index: {0}]
  %s10 = inlined_call_operand.vmem [shape: f32[256,128], index: 10, kind: output, shape index: {1}]
  %11 = xla_tuple %s9, %s10
  %s12 = sld [smem:[#allocation0]]
  $region77: #{human_node_rnn_forward.1} parent=0
    _
  %s14 = ssub.s32 1, %s12
  %s15 = scalar_select 0, %s14, %s12
  loop: start=0, step=1, limit=4
  $region2: #{human_node_rnn_forward.1} parent=0 // loop_pre_header
    _
  $region3: #{human_node_rnn_forward.1} parent=0 // loop_header
    %s17 = sphi 0, %s21
    %p18 = scmp.ge.s32.totalorder %s17, 4
    %s27 = sphi 0, %s29
    %s30 = sphi 0, %s27
    %s31 = sphi 0, %s30
    %s47 = sphi 0, %s31
    %s53 = sphi 0, %s55
    %s56 = sphi 0, %s53
    %s57 = sphi 0, %s56
    %s73 = sphi 0, %s57
    %s79 = sphi 0, %s81
    %s82 = sphi 0, %s79
    %s83 = sphi 0, %s82
    %s99 = sphi 0, %s83
    %s105 = sphi 0, %s107
    %s108 = sphi 0, %s105
    %s109 = sphi 0, %s108
    %s125 = sphi 0, %s109
    %s131 = sphi 0, %s133
    %s134 = sphi 0, %s131
    %s135 = sphi 0, %s134
    %s151 = sphi 0, %s135
    %s155 = sphi 0, %s155
    %s157 = sphi 0, %s155
    %s158 = sphi 0, %s157
    %s172 = sphi 0, %s158
    %s176 = sphi 0, %s176
    %s178 = sphi 0, %s176
    %s179 = sphi 0, %s178
    %s193 = sphi 0, %s179
    %s197 = sphi 0, %s197
    %s199 = sphi 0, %s197
    %s200 = sphi 0, %s199
    %s214 = sphi 0, %s200
    %s218 = sphi 0, %s218
    %s220 = sphi 0, %s218
    %s221 = sphi 0, %s220
    %s235 = sphi 0, %s221
    %s241 = sphi 0, %s243
    %s244 = sphi 0, %s241
    %s245 = sphi 0, %s244
    %s261 = sphi 0, %s245
    %s267 = sphi 0, %s269
    %s270 = sphi 0, %s267
    %s271 = sphi 0, %s270
    %s287 = sphi 0, %s271
  $region4: #{human_node_rnn_forward.1} parent=0 // loop_header_branch
    %20 = sbr.rel (%p18) target = $region8
  $region5: #{human_node_rnn_forward.1} parent=0 // loop_body
    %s22 = ssub.s32 %s17, 1
    %s23 = ssub.s32 %s17, 2
    %s24 = sadd.s32 %s17, 1
    %s25 = ssub.s32 %s17, %s24
    %p26 = scmp.eq.s32.totalorder %s25, 0
    %s28 = sadd.s32 %s27, 1
    %s29 = scalar_select %p26, %s27, %s28
    %p32 = pneg %p26
    %p33 = scmp.eq.s32.totalorder %s17, 1
    %p34 = por %p32, %p33
    %p35 = scmp.ne.s32.totalorder %s27, %s30
    %p36 = scmp.eq.s32.totalorder %s17, 0
    %p37 = por %p35, %p36
    %p38 = scmp.ne.s32.totalorder %s27, %s30
    %p39 = scmp.eq.s32.totalorder %s22, 1
    %p40 = por %p38, %p39
    %p41 = scmp.ne.s32.totalorder %s30, %s31
    %p42 = scmp.eq.s32.totalorder %s22, 0
    %p43 = por %p41, %p42
    %p44 = scmp.ne.s32.totalorder %s30, %s31
    %p45 = scmp.eq.s32.totalorder %s23, 1
    %p46 = por %p44, %p45
    %p48 = scmp.ne.s32.totalorder %s31, %s47
    %p49 = scmp.eq.s32.totalorder %s23, 0
    %p50 = por %p48, %p49
    %s51 = ssub.s32 %s17, %s24
    %p52 = scmp.eq.s32.totalorder %s51, 0
    %s54 = sadd.s32 %s53, 1
    %s55 = scalar_select %p52, %s53, %s54
    %p58 = pneg %p52
    %p59 = scmp.eq.s32.totalorder %s17, 1
    %p60 = por %p58, %p59
    %p61 = scmp.ne.s32.totalorder %s53, %s56
    %p62 = scmp.eq.s32.totalorder %s17, 0
    %p63 = por %p61, %p62
    %p64 = scmp.ne.s32.totalorder %s53, %s56
    %p65 = scmp.eq.s32.totalorder %s22, 1
    %p66 = por %p64, %p65
    %p67 = scmp.ne.s32.totalorder %s56, %s57
    %p68 = scmp.eq.s32.totalorder %s22, 0
    %p69 = por %p67, %p68
    %p70 = scmp.ne.s32.totalorder %s56, %s57
    %p71 = scmp.eq.s32.totalorder %s23, 1
    %p72 = por %p70, %p71
    %p74 = scmp.ne.s32.totalorder %s57, %s73
    %p75 = scmp.eq.s32.totalorder %s23, 0
    %p76 = por %p74, %p75
    %s77 = ssub.s32 %s17, %s24
    %p78 = scmp.eq.s32.totalorder %s77, 0
    %s80 = sadd.s32 %s79, 1
    %s81 = scalar_select %p78, %s79, %s80
    %p84 = pneg %p78
    %p85 = scmp.eq.s32.totalorder %s17, 1
    %p86 = por %p84, %p85
    %p87 = scmp.ne.s32.totalorder %s79, %s82
    %p88 = scmp.eq.s32.totalorder %s17, 0
    %p89 = por %p87, %p88
    %p90 = scmp.ne.s32.totalorder %s79, %s82
    %p91 = scmp.eq.s32.totalorder %s22, 1
    %p92 = por %p90, %p91
    %p93 = scmp.ne.s32.totalorder %s82, %s83
    %p94 = scmp.eq.s32.totalorder %s22, 0
    %p95 = por %p93, %p94
    %p96 = scmp.ne.s32.totalorder %s82, %s83
    %p97 = scmp.eq.s32.totalorder %s23, 1
    %p98 = por %p96, %p97
    %p100 = scmp.ne.s32.totalorder %s83, %s99
    %p101 = scmp.eq.s32.totalorder %s23, 0
    %p102 = por %p100, %p101
    %s103 = ssub.s32 %s17, %s24
    %p104 = scmp.eq.s32.totalorder %s103, 0
    %s106 = sadd.s32 %s105, 1
    %s107 = scalar_select %p104, %s105, %s106
    %p110 = pneg %p104
    %p111 = scmp.eq.s32.totalorder %s17, 1
    %p112 = por %p110, %p111
    %p113 = scmp.ne.s32.totalorder %s105, %s108
    %p114 = scmp.eq.s32.totalorder %s17, 0
    %p115 = por %p113, %p114
    %p116 = scmp.ne.s32.totalorder %s105, %s108
    %p117 = scmp.eq.s32.totalorder %s22, 1
    %p118 = por %p116, %p117
    %p119 = scmp.ne.s32.totalorder %s108, %s109
    %p120 = scmp.eq.s32.totalorder %s22, 0
    %p121 = por %p119, %p120
    %p122 = scmp.ne.s32.totalorder %s108, %s109
    %p123 = scmp.eq.s32.totalorder %s23, 1
    %p124 = por %p122, %p123
    %p126 = scmp.ne.s32.totalorder %s109, %s125
    %p127 = scmp.eq.s32.totalorder %s23, 0
    %p128 = por %p126, %p127
    %s129 = ssub.s32 %s17, %s24
    %p130 = scmp.eq.s32.totalorder %s129, 0
    %s132 = sadd.s32 %s131, 1
    %s133 = scalar_select %p130, %s131, %s132
    %p136 = pneg %p130
    %p137 = scmp.eq.s32.totalorder %s17, 1
    %p138 = por %p136, %p137
    %p139 = scmp.ne.s32.totalorder %s131, %s134
    %p140 = scmp.eq.s32.totalorder %s17, 0
    %p141 = por %p139, %p140
    %p142 = scmp.ne.s32.totalorder %s131, %s134
    %p143 = scmp.eq.s32.totalorder %s22, 1
    %p144 = por %p142, %p143
    %p145 = scmp.ne.s32.totalorder %s134, %s135
    %p146 = scmp.eq.s32.totalorder %s22, 0
    %p147 = por %p145, %p146
    %p148 = scmp.ne.s32.totalorder %s134, %s135
    %p149 = scmp.eq.s32.totalorder %s23, 1
    %p150 = por %p148, %p149
    %p152 = scmp.ne.s32.totalorder %s135, %s151
    %p153 = scmp.eq.s32.totalorder %s23, 0
    %p154 = por %p152, %p153
    %s156 = sadd.s32 %s155, 1
    %p159 = scmp.eq.s32.totalorder %s17, 1
    %p160 = scmp.ne.s32.totalorder %s155, %s157
    %p161 = scmp.eq.s32.totalorder %s17, 0
    %p162 = por %p160, %p161
    %p163 = scmp.ne.s32.totalorder %s155, %s157
    %p164 = scmp.eq.s32.totalorder %s22, 1
    %p165 = por %p163, %p164
    %p166 = scmp.ne.s32.totalorder %s157, %s158
    %p167 = scmp.eq.s32.totalorder %s22, 0
    %p168 = por %p166, %p167
    %p169 = scmp.ne.s32.totalorder %s157, %s158
    %p170 = scmp.eq.s32.totalorder %s23, 1
    %p171 = por %p169, %p170
    %p173 = scmp.ne.s32.totalorder %s158, %s172
    %p174 = scmp.eq.s32.totalorder %s23, 0
    %p175 = por %p173, %p174
    %s177 = sadd.s32 %s176, 1
    %p180 = scmp.eq.s32.totalorder %s17, 1
    %p181 = scmp.ne.s32.totalorder %s176, %s178
    %p182 = scmp.eq.s32.totalorder %s17, 0
    %p183 = por %p181, %p182
    %p184 = scmp.ne.s32.totalorder %s176, %s178
    %p185 = scmp.eq.s32.totalorder %s22, 1
    %p186 = por %p184, %p185
    %p187 = scmp.ne.s32.totalorder %s178, %s179
    %p188 = scmp.eq.s32.totalorder %s22, 0
    %p189 = por %p187, %p188
    %p190 = scmp.ne.s32.totalorder %s178, %s179
    %p191 = scmp.eq.s32.totalorder %s23, 1
    %p192 = por %p190, %p191
    %p194 = scmp.ne.s32.totalorder %s179, %s193
    %p195 = scmp.eq.s32.totalorder %s23, 0
    %p196 = por %p194, %p195
    %s198 = sadd.s32 %s197, 1
    %p201 = scmp.eq.s32.totalorder %s17, 1
    %p202 = scmp.ne.s32.totalorder %s197, %s199
    %p203 = scmp.eq.s32.totalorder %s17, 0
    %p204 = por %p202, %p203
    %p205 = scmp.ne.s32.totalorder %s197, %s199
    %p206 = scmp.eq.s32.totalorder %s22, 1
    %p207 = por %p205, %p206
    %p208 = scmp.ne.s32.totalorder %s199, %s200
    %p209 = scmp.eq.s32.totalorder %s22, 0
    %p210 = por %p208, %p209
    %p211 = scmp.ne.s32.totalorder %s199, %s200
    %p212 = scmp.eq.s32.totalorder %s23, 1
    %p213 = por %p211, %p212
    %p215 = scmp.ne.s32.totalorder %s200, %s214
    %p216 = scmp.eq.s32.totalorder %s23, 0
    %p217 = por %p215, %p216
    %s219 = sadd.s32 %s218, 1
    %p222 = scmp.eq.s32.totalorder %s17, 1
    %p223 = scmp.ne.s32.totalorder %s218, %s220
    %p224 = scmp.eq.s32.totalorder %s17, 0
    %p225 = por %p223, %p224
    %p226 = scmp.ne.s32.totalorder %s218, %s220
    %p227 = scmp.eq.s32.totalorder %s22, 1
    %p228 = por %p226, %p227
    %p229 = scmp.ne.s32.totalorder %s220, %s221
    %p230 = scmp.eq.s32.totalorder %s22, 0
    %p231 = por %p229, %p230
    %p232 = scmp.ne.s32.totalorder %s220, %s221
    %p233 = scmp.eq.s32.totalorder %s23, 1
    %p234 = por %p232, %p233
    %p236 = scmp.ne.s32.totalorder %s221, %s235
    %p237 = scmp.eq.s32.totalorder %s23, 0
    %p238 = por %p236, %p237
    %s239 = ssub.s32 %s17, %s24
    %p240 = scmp.eq.s32.totalorder %s239, 0
    %s242 = sadd.s32 %s241, 1
    %s243 = scalar_select %p240, %s241, %s242
    %p246 = pneg %p240
    %p247 = scmp.eq.s32.totalorder %s17, 1
    %p248 = por %p246, %p247
    %p249 = scmp.ne.s32.totalorder %s241, %s244
    %p250 = scmp.eq.s32.totalorder %s17, 0
    %p251 = por %p249, %p250
    %p252 = scmp.ne.s32.totalorder %s241, %s244
    %p253 = scmp.eq.s32.totalorder %s22, 1
    %p254 = por %p252, %p253
    %p255 = scmp.ne.s32.totalorder %s244, %s245
    %p256 = scmp.eq.s32.totalorder %s22, 0
    %p257 = por %p255, %p256
    %p258 = scmp.ne.s32.totalorder %s244, %s245
    %p259 = scmp.eq.s32.totalorder %s23, 1
    %p260 = por %p258, %p259
    %p262 = scmp.ne.s32.totalorder %s245, %s261
    %p263 = scmp.eq.s32.totalorder %s23, 0
    %p264 = por %p262, %p263
    %s265 = ssub.s32 %s17, %s24
    %p266 = scmp.eq.s32.totalorder %s265, 0
    %s268 = sadd.s32 %s267, 1
    %s269 = scalar_select %p266, %s267, %s268
    %p272 = pneg %p266
    %p273 = scmp.eq.s32.totalorder %s17, 1
    %p274 = por %p272, %p273
    %p275 = scmp.ne.s32.totalorder %s267, %s270
    %p276 = scmp.eq.s32.totalorder %s17, 0
    %p277 = por %p275, %p276
    %p278 = scmp.ne.s32.totalorder %s267, %s270
    %p279 = scmp.eq.s32.totalorder %s22, 1
    %p280 = por %p278, %p279
    %p281 = scmp.ne.s32.totalorder %s270, %s271
    %p282 = scmp.eq.s32.totalorder %s22, 0
    %p283 = por %p281, %p282
    %p284 = scmp.ne.s32.totalorder %s270, %s271
    %p285 = scmp.eq.s32.totalorder %s23, 1
    %p286 = por %p284, %p285
    %p288 = scmp.ne.s32.totalorder %s271, %s287
    %p289 = scmp.eq.s32.totalorder %s23, 0
    %p290 = por %p288, %p289
    %p291 = scmp.le.s32.totalorder 1, %s17
    %p292 = scmp.lt.s32.totalorder %s17, 3
    %p293 = pnand %p291, %p292
    %p294 = pneg %p293
    // Predicated region
    $region9: #{human_node_rnn_forward.1} parent=5 // pred_check
      _
    $region10: #{human_node_rnn_forward.1} parent=5 // pred_check_branch
      %296 = sbr.rel (%p293) target = $region12
    $region11: #{human_node_rnn_forward.1} parent=5 // pred_region
      %s297 = ssub.s32 %s17, 1
      // Predicated region
      $region13: #{human_node_rnn_forward.1} parent=11 // pred_check
        %p298 = pneg %p168
      $region14: #{human_node_rnn_forward.1} parent=11 // pred_check_branch
        %300 = sbr.rel (%p298) target = $region16
      $region15: #{human_node_rnn_forward.1} parent=11 // pred_region
        _
      $region16: #{human_node_rnn_forward.1} parent=11 // pred_fallthru
        _
      // Predicated region
      $region17: #{human_node_rnn_forward.1} parent=11 // pred_check
        %p301 = pneg %p189
      $region18: #{human_node_rnn_forward.1} parent=11 // pred_check_branch
        %303 = sbr.rel (%p301) target = $region20
      $region19: #{human_node_rnn_forward.1} parent=11 // pred_region
        _
      $region20: #{human_node_rnn_forward.1} parent=11 // pred_fallthru
        _
      // Predicated region
      $region21: #{human_node_rnn_forward.1} parent=11 // pred_check
        %p304 = pneg %p210
      $region22: #{human_node_rnn_forward.1} parent=11 // pred_check_branch
        %306 = sbr.rel (%p304) target = $region24
      $region23: #{human_node_rnn_forward.1} parent=11 // pred_region
        _
      $region24: #{human_node_rnn_forward.1} parent=11 // pred_fallthru
        _
      // Predicated region
      $region25: #{human_node_rnn_forward.1} parent=11 // pred_check
        %p307 = pneg %p231
      $region26: #{human_node_rnn_forward.1} parent=11 // pred_check_branch
        %309 = sbr.rel (%p307) target = $region28
      $region27: #{human_node_rnn_forward.1} parent=11 // pred_region
        _
      $region28: #{human_node_rnn_forward.1} parent=11 // pred_fallthru
        _
    $region12: #{human_node_rnn_forward.1} parent=5 // pred_fallthru
      _
    %p310 = scmp.lt.s32.totalorder %s17, 2
    // Predicated region
    $region29: #{human_node_rnn_forward.1} parent=5 // pred_check
      %p311 = pneg %p310
    $region30: #{human_node_rnn_forward.1} parent=5 // pred_check_branch
      %313 = sbr.rel (%p311) target = $region32
    $region31: #{human_node_rnn_forward.1} parent=5 // pred_region
      // Predicated region
      $region33: #{human_node_rnn_forward.1} parent=31 // pred_check
        %p314 = pneg %p37
      $region34: #{human_node_rnn_forward.1} parent=31 // pred_check_branch
        %316 = sbr.rel (%p314) target = $region36
      $region35: #{human_node_rnn_forward.1} parent=31 // pred_region
        %s317 = smul.u32 16, %s17
        %p318 = scmp.lt.s32.totalorder %s317, 31
        %s319 = scalar_select %p318, %s317, 31
        %s320 = smul.addr %s319, 8
        %s321 = scalar_lea.vmem %s0, %s320
        %s322 = smul.u32 16, %s17
      $region36: #{human_node_rnn_forward.1} parent=31 // pred_fallthru
        _
      // Predicated region
      $region37: #{human_node_rnn_forward.1} parent=31 // pred_check
        %p323 = pneg %p63
      $region38: #{human_node_rnn_forward.1} parent=31 // pred_check_branch
        %325 = sbr.rel (%p323) target = $region40
      $region39: #{human_node_rnn_forward.1} parent=31 // pred_region
        %s326 = smul.u32 16, %s17
        %p327 = scmp.lt.s32.totalorder %s326, 31
        %s328 = scalar_select %p327, %s326, 31
        %s329 = smul.addr %s328, 8
        %s330 = scalar_lea.vmem %s1, %s329
        %s331 = smul.u32 16, %s17
      $region40: #{human_node_rnn_forward.1} parent=31 // pred_fallthru
        _
      // Predicated region
      $region41: #{human_node_rnn_forward.1} parent=31 // pred_check
        %p332 = pneg %p89
      $region42: #{human_node_rnn_forward.1} parent=31 // pred_check_branch
        %334 = sbr.rel (%p332) target = $region44
      $region43: #{human_node_rnn_forward.1} parent=31 // pred_region
        %s335 = smul.u32 16, %s17
        %p336 = scmp.lt.s32.totalorder %s335, 31
        %s337 = scalar_select %p336, %s335, 31
        %s338 = smul.addr %s337, 8
        %s339 = scalar_lea.vmem %s2, %s338
        %s340 = smul.u32 16, %s17
      $region44: #{human_node_rnn_forward.1} parent=31 // pred_fallthru
        _
      // Predicated region
      $region45: #{human_node_rnn_forward.1} parent=31 // pred_check
        %p341 = pneg %p115
      $region46: #{human_node_rnn_forward.1} parent=31 // pred_check_branch
        %343 = sbr.rel (%p341) target = $region48
      $region47: #{human_node_rnn_forward.1} parent=31 // pred_region
        %s344 = smul.u32 16, %s17
        %p345 = scmp.lt.s32.totalorder %s344, 31
        %s346 = scalar_select %p345, %s344, 31
        %s347 = smul.addr %s346, 8
        %s348 = scalar_lea.vmem %s3, %s347
        %s349 = smul.u32 16, %s17
      $region48: #{human_node_rnn_forward.1} parent=31 // pred_fallthru
        _
      // Predicated region
      $region49: #{human_node_rnn_forward.1} parent=31 // pred_check
        %p350 = pneg %p141
      $region50: #{human_node_rnn_forward.1} parent=31 // pred_check_branch
        %352 = sbr.rel (%p350) target = $region52
      $region51: #{human_node_rnn_forward.1} parent=31 // pred_region
        %s353 = smul.u32 16, %s17
        %p354 = scmp.lt.s32.totalorder %s353, 31
        %s355 = scalar_select %p354, %s353, 31
        %s356 = smul.addr %s355, 8
        %s357 = scalar_lea.vmem %s4, %s356
        %s358 = smul.u32 16, %s17
      $region52: #{human_node_rnn_forward.1} parent=31 // pred_fallthru
        _
    $region32: #{human_node_rnn_forward.1} parent=5 // pred_fallthru
      _
    %p359 = scmp.le.s32.totalorder 1, %s17
    %p360 = scmp.lt.s32.totalorder %s17, 3
    %p361 = pnand %p359, %p360
    %p362 = pneg %p361
    // Predicated region
    $region53: #{human_node_rnn_forward.1} parent=5 // pred_check
      _
    $region54: #{human_node_rnn_forward.1} parent=5 // pred_check_branch
      %364 = sbr.rel (%p361) target = $region56
    $region55: #{human_node_rnn_forward.1} parent=5 // pred_region
      %s365 = ssub.s32 %s17, 1
      %s366 = smul.u32 16, %s22
      %p367 = scmp.lt.s32.totalorder %s366, 31
      %s368 = scalar_select %p367, %s366, 31
      %s369 = smul.addr %s368, 8
      %s370 = scalar_lea.vmem %s0, %s369
      %p371 = pneg %p43
      %p372 = pneg %p40
      %s373 = smul.u32 16, %s22
      %p374 = scmp.lt.s32.totalorder %s373, 31
      %s375 = scalar_select %p374, %s373, 31
      %s376 = smul.addr %s375, 8
      %s377 = scalar_lea.vmem %s1, %s376
      %p378 = pneg %p69
      %p379 = pneg %p66
      %s380 = smul.u32 16, %s22
      %p381 = scmp.lt.s32.totalorder %s380, 31
      %s382 = scalar_select %p381, %s380, 31
      %s383 = smul.addr %s382, 8
      %s384 = scalar_lea.vmem %s2, %s383
      %p385 = pneg %p95
      %p386 = pneg %p92
      %s387 = smul.u32 16, %s22
      %p388 = scmp.lt.s32.totalorder %s387, 31
      %s389 = scalar_select %p388, %s387, 31
      %s390 = smul.addr %s389, 8
      %s391 = scalar_lea.vmem %s3, %s390
      %p392 = pneg %p121
      %p393 = pneg %p118
      %s394 = smul.u32 16, %s22
      %p395 = scmp.lt.s32.totalorder %s394, 31
      %s396 = scalar_select %p395, %s394, 31
      %s397 = smul.addr %s396, 8
      %s398 = scalar_lea.vmem %s4, %s397
      %p399 = pneg %p147
      %p400 = pneg %p144
      %p401 = pneg %p168
      %p402 = pneg %p165
      %p403 = pneg %p189
      %p404 = pneg %p186
      %p405 = pneg %p210
      %p406 = pneg %p207
      %p407 = pneg %p231
      %p408 = pneg %p228
      %p409 = pneg %p257
      %p410 = pneg %p254
      %s411 = smul.u32 16, %s22
      %p412 = scmp.lt.s32.totalorder %s411, 31
      %s413 = scalar_select %p412, %s411, 31
      %s414 = smul.addr %s413, 8
      %s415 = scalar_lea.vmem %s9, %s414
      %p416 = pneg %p283
      %p417 = pneg %p280
      %s418 = smul.u32 16, %s22
      %p419 = scmp.lt.s32.totalorder %s418, 31
      %s420 = scalar_select %p419, %s418, 31
      %s421 = smul.addr %s420, 8
      %s422 = scalar_lea.vmem %s10, %s421
      %s423 = smul.u32 16, %s22
      %p424 = scmp.lt.s32.totalorder %s423, 31
      %s425 = scalar_select %p424, %s423, 31
      %s426 = smul.addr %s425, 8
      %s427 = scalar_lea.vmem %s0, %s426
      %s428 = smul.u32 16, %s22
      %s429 = smul.u32 16, %s22
      %p430 = scmp.lt.s32.totalorder %s429, 31
      %s431 = scalar_select %p430, %s429, 31
      %s432 = smul.addr %s431, 8
      %s433 = scalar_lea.vmem %s1, %s432
      %s434 = smul.u32 16, %s22
      %s435 = smul.u32 16, %s22
      %p436 = scmp.lt.s32.totalorder %s435, 31
      %s437 = scalar_select %p436, %s435, 31
      %s438 = smul.addr %s437, 8
      %s439 = scalar_lea.vmem %s2, %s438
      %s440 = smul.u32 16, %s22
      %s441 = smul.u32 16, %s22
      %p442 = scmp.lt.s32.totalorder %s441, 31
      %s443 = scalar_select %p442, %s441, 31
      %s444 = smul.addr %s443, 8
      %s445 = scalar_lea.vmem %s3, %s444
      %s446 = smul.u32 16, %s22
      %s447 = smul.u32 16, %s22
      %p448 = scmp.lt.s32.totalorder %s447, 31
      %s449 = scalar_select %p448, %s447, 31
      %s450 = smul.addr %s449, 8
      %s451 = scalar_lea.vmem %s4, %s450
      %s452 = smul.u32 16, %s22
      %s453 = smul.u32 16, %s22
      %p454 = scmp.lt.s32.totalorder %s453, 31
      %s455 = scalar_select %p454, %s453, 31
      %s456 = smul.addr %s455, 8
      %s457 = scalar_lea.vmem %s9, %s456
      %s458 = smul.u32 16, %s22
      %s459 = smul.u32 16, %s22
      %p460 = scmp.lt.s32.totalorder %s459, 31
      %s461 = scalar_select %p460, %s459, 31
      %s462 = smul.addr %s461, 8
      %s463 = scalar_lea.vmem %s10, %s462
      %s464 = smul.u32 16, %s22
      %v466 = vld [vmem:[%s8] sm:$0xff]
      %v467 = vld [vmem:[%s8 + $0x8] sm:$0xff]
      %v468 = vld [vmem:[%s427] sm:$0xff]
      %v469 = vld [vmem:[%s427 + $0x8] sm:$0xff]
      %v470 = vld [vmem:[%s427 + $0x10] sm:$0xff]
      %v471 = vld [vmem:[%s427 + $0x18] sm:$0xff]
      %v472 = vld [vmem:[%s427 + $0x20] sm:$0xff]
      %v473 = vld [vmem:[%s427 + $0x28] sm:$0xff]
      %v474 = vld [vmem:[%s427 + $0x30] sm:$0xff]
      %v475 = vld [vmem:[%s427 + $0x38] sm:$0xff]
      %v476 = vld [vmem:[%s427 + $0x40] sm:$0xff]
      %v477 = vld [vmem:[%s427 + $0x48] sm:$0xff]
      %v478 = vld [vmem:[%s427 + $0x50] sm:$0xff]
      %v479 = vld [vmem:[%s427 + $0x58] sm:$0xff]
      %v480 = vld [vmem:[%s427 + $0x60] sm:$0xff]
      %v481 = vld [vmem:[%s427 + $0x68] sm:$0xff]
      %v482 = vld [vmem:[%s427 + $0x70] sm:$0xff]
      %v483 = vld [vmem:[%s427 + $0x78] sm:$0xff]
      %v484 = vld [vmem:[%s445] sm:$0xff]
      %v485 = vld [vmem:[%s445 + $0x8] sm:$0xff]
      %v486 = vld [vmem:[%s445 + $0x10] sm:$0xff]
      %v487 = vld [vmem:[%s445 + $0x18] sm:$0xff]
      %v488 = vld [vmem:[%s445 + $0x20] sm:$0xff]
      %v489 = vld [vmem:[%s445 + $0x28] sm:$0xff]
      %v490 = vld [vmem:[%s445 + $0x30] sm:$0xff]
      %v491 = vld [vmem:[%s445 + $0x38] sm:$0xff]
      %v492 = vld [vmem:[%s445 + $0x40] sm:$0xff]
      %v493 = vld [vmem:[%s445 + $0x48] sm:$0xff]
      %v494 = vld [vmem:[%s445 + $0x50] sm:$0xff]
      %v495 = vld [vmem:[%s445 + $0x58] sm:$0xff]
      %v496 = vld [vmem:[%s445 + $0x60] sm:$0xff]
      %v497 = vld [vmem:[%s445 + $0x68] sm:$0xff]
      %v498 = vld [vmem:[%s445 + $0x70] sm:$0xff]
      %v499 = vld [vmem:[%s445 + $0x78] sm:$0xff]
      %v500 = vld [vmem:[%s451] sm:$0xff]
      %v501 = vld [vmem:[%s451 + $0x8] sm:$0xff]
      %v502 = vld [vmem:[%s451 + $0x10] sm:$0xff]
      %v503 = vld [vmem:[%s451 + $0x18] sm:$0xff]
      %v504 = vld [vmem:[%s451 + $0x20] sm:$0xff]
      %v505 = vld [vmem:[%s451 + $0x28] sm:$0xff]
      %v506 = vld [vmem:[%s451 + $0x30] sm:$0xff]
      %v507 = vld [vmem:[%s451 + $0x38] sm:$0xff]
      %v508 = vld [vmem:[%s451 + $0x40] sm:$0xff]
      %v509 = vld [vmem:[%s451 + $0x48] sm:$0xff]
      %v510 = vld [vmem:[%s451 + $0x50] sm:$0xff]
      %v511 = vld [vmem:[%s451 + $0x58] sm:$0xff]
      %v512 = vld [vmem:[%s451 + $0x60] sm:$0xff]
      %v513 = vld [vmem:[%s451 + $0x68] sm:$0xff]
      %v514 = vld [vmem:[%s451 + $0x70] sm:$0xff]
      %v515 = vld [vmem:[%s451 + $0x78] sm:$0xff]
      %v516 = vld [vmem:[%s433] sm:$0xff]
      %v517 = vld [vmem:[%s433 + $0x8] sm:$0xff]
      %v518 = vld [vmem:[%s433 + $0x10] sm:$0xff]
      %v519 = vld [vmem:[%s433 + $0x18] sm:$0xff]
      %v520 = vld [vmem:[%s433 + $0x20] sm:$0xff]
      %v521 = vld [vmem:[%s433 + $0x28] sm:$0xff]
      %v522 = vld [vmem:[%s433 + $0x30] sm:$0xff]
      %v523 = vld [vmem:[%s433 + $0x38] sm:$0xff]
      %v524 = vld [vmem:[%s433 + $0x40] sm:$0xff]
      %v525 = vld [vmem:[%s433 + $0x48] sm:$0xff]
      %v526 = vld [vmem:[%s433 + $0x50] sm:$0xff]
      %v527 = vld [vmem:[%s433 + $0x58] sm:$0xff]
      %v528 = vld [vmem:[%s433 + $0x60] sm:$0xff]
      %v529 = vld [vmem:[%s433 + $0x68] sm:$0xff]
      %v530 = vld [vmem:[%s433 + $0x70] sm:$0xff]
      %v531 = vld [vmem:[%s433 + $0x78] sm:$0xff]
      %v532 = vpack.c.bf16 %v517, %v516
      %v533 = vpack.c.bf16 %v519, %v518
      %v534 = vpack.c.bf16 %v521, %v520
      %v535 = vpack.c.bf16 %v523, %v522
      %v536 = vpack.c.bf16 %v525, %v524
      %v537 = vpack.c.bf16 %v527, %v526
      %v538 = vpack.c.bf16 %v529, %v528
      %v539 = vpack.c.bf16 %v531, %v530
      %v540 = vld [vmem:[%s5] sm:$0xf]
      %v541 = vld [vmem:[%s5 + $0x4] sm:$0xf]
      %v542 = vld [vmem:[%s5 + $0x8] sm:$0xf]
      %v543 = vld [vmem:[%s5 + $0xc] sm:$0xf]
      %v544 = vld [vmem:[%s5 + $0x10] sm:$0xf]
      %v545 = vld [vmem:[%s5 + $0x14] sm:$0xf]
      %v546 = vld [vmem:[%s5 + $0x18] sm:$0xf]
      %v547 = vld [vmem:[%s5 + $0x1c] sm:$0xf]
      %v548 = vld [vmem:[%s439] sm:$0xff]
      %v549 = vld [vmem:[%s439 + $0x8] sm:$0xff]
      %v550 = vld [vmem:[%s439 + $0x10] sm:$0xff]
      %v551 = vld [vmem:[%s439 + $0x18] sm:$0xff]
      %v552 = vld [vmem:[%s439 + $0x20] sm:$0xff]
      %v553 = vld [vmem:[%s439 + $0x28] sm:$0xff]
      %v554 = vld [vmem:[%s439 + $0x30] sm:$0xff]
      %v555 = vld [vmem:[%s439 + $0x38] sm:$0xff]
      %v556 = vld [vmem:[%s439 + $0x40] sm:$0xff]
      %v557 = vld [vmem:[%s439 + $0x48] sm:$0xff]
      %v558 = vld [vmem:[%s439 + $0x50] sm:$0xff]
      %v559 = vld [vmem:[%s439 + $0x58] sm:$0xff]
      %v560 = vld [vmem:[%s439 + $0x60] sm:$0xff]
      %v561 = vld [vmem:[%s439 + $0x68] sm:$0xff]
      %v562 = vld [vmem:[%s439 + $0x70] sm:$0xff]
      %v563 = vld [vmem:[%s439 + $0x78] sm:$0xff]
      %v564 = vpack.c.bf16 %v549, %v548
      %v565 = vpack.c.bf16 %v551, %v550
      %v566 = vpack.c.bf16 %v553, %v552
      %v567 = vpack.c.bf16 %v555, %v554
      %v568 = vpack.c.bf16 %v557, %v556
      %v569 = vpack.c.bf16 %v559, %v558
      %v570 = vpack.c.bf16 %v561, %v560
      %v571 = vpack.c.bf16 %v563, %v562
      %v572 = vld [vmem:[%s5 + $0x20] sm:$0xf]
      %v573 = vld [vmem:[%s5 + $0x24] sm:$0xf]
      %v574 = vld [vmem:[%s5 + $0x28] sm:$0xf]
      %v575 = vld [vmem:[%s5 + $0x2c] sm:$0xf]
      %v576 = vld [vmem:[%s5 + $0x30] sm:$0xf]
      %v577 = vld [vmem:[%s5 + $0x34] sm:$0xf]
      %v578 = vld [vmem:[%s5 + $0x38] sm:$0xf]
      %v579 = vld [vmem:[%s5 + $0x3c] sm:$0xf]
      %v588 = vunpack.c.l.b16 %v572
      %v589 = vunpack.c.l.b16 %v573
      %v590 = vunpack.c.l.b16 %v574
      %v591 = vunpack.c.l.b16 %v575
      %v592 = vunpack.c.l.b16 %v576
      %v593 = vunpack.c.l.b16 %v577
      %v594 = vunpack.c.l.b16 %v578
      %v595 = vunpack.c.l.b16 %v579
      %v596 = vpack.c.b16 %v589, %v588
      %v597 = vpack.c.b16 %v591, %v590
      %v598 = vpack.c.b16 %v593, %v592
      %v599 = vpack.c.b16 %v595, %v594
      %vm604 = vcmask 523264
      %v606 = vsel %vm604, %v564, 0
      %v609 = vsel %vm604, %v565, 0
      %v612 = vsel %vm604, %v566, 0
      %v615 = vsel %vm604, %v567, 0
      %v618 = vsel %vm604, %v568, 0
      %v621 = vsel %vm604, %v569, 0
      %v624 = vsel %vm604, %v570, 0
      %v627 = vsel %vm604, %v571, 0
      %629 = vmatprep.subr.bf16.mxu0 0
      %630 = vmatpush1.bf16.msra.mxu0 0
      %631 = vmatprep.subr.bf16.mxu0 0
      %632 = vmatpush1.bf16.msra.mxu0 0
      %633 = vmatprep.subr.bf16.mxu0 0
      %634 = vmatpush1.bf16.msra.mxu0 0
      %635 = vmatprep.subr.bf16.mxu0 0
      %636 = vmatpush1.bf16.msra.mxu0 0
      %637 = vmatprep.subr.bf16.mxu0 0
      %638 = vmatpush1.bf16.msra.mxu0 %v599
      %639 = vmatprep.subr.bf16.mxu0 0
      %640 = vmatpush1.bf16.msra.mxu0 %v598
      %641 = vmatprep.subr.bf16.mxu0 0
      %642 = vmatpush1.bf16.msra.mxu0 %v597
      %643 = vmatprep.subr.bf16.mxu0 0
      %644 = vmatpush1.bf16.msra.mxu0 %v596
      %645 = vmatprep.subr.bf16.mxu0 0
      %646 = vmatpush2.bf16.msra.mxu0 0
      %647 = vmatprep.subr.bf16.mxu0 0
      %648 = vmatpush2.bf16.msra.mxu0 0
      %649 = vmatprep.subr.bf16.mxu0 0
      %650 = vmatpush2.bf16.msra.mxu0 0
      %651 = vmatprep.subr.bf16.mxu0 0
      %652 = vmatpush2.bf16.msra.mxu0 0
      %653 = vmatprep.subr.bf16.mxu0 0
      %654 = vmatpush2.bf16.msra.mxu0 0
      %655 = vmatprep.subr.bf16.mxu0 0
      %656 = vmatpush2.bf16.msra.mxu0 0
      %657 = vmatprep.subr.bf16.mxu0 0
      %658 = vmatpush2.bf16.msra.mxu0 0
      %659 = vmatprep.subr.bf16.mxu0 0
      %660 = vmatpush2.bf16.msra.mxu0 0
      %661 = vmatprep.mubr.bf16.mxu0 0
      %662 = vmatmul.mubr.bf16.gmra.mxu0 %v606
      %v663 = vpop.f32.mrf.mxu0
      %v664 = vadd.f32 0.0, %v663
      %v665 = vpop.f32.mrf.mxu0
      %v666 = vpop.f32.mrf.mxu0
      %v667 = vadd.f32 0.0, %v666
      %v668 = vpop.f32.mrf.mxu0
      %669 = vmatprep.mubr.bf16.mxu0 0
      %670 = vmatmul.mubr.bf16.gmra.mxu0 %v609
      %v671 = vpop.f32.mrf.mxu0
      %v672 = vadd.f32 0.0, %v671
      %v673 = vpop.f32.mrf.mxu0
      %v674 = vpop.f32.mrf.mxu0
      %v675 = vadd.f32 0.0, %v674
      %v676 = vpop.f32.mrf.mxu0
      %677 = vmatprep.mubr.bf16.mxu0 0
      %678 = vmatmul.mubr.bf16.gmra.mxu0 %v612
      %v679 = vpop.f32.mrf.mxu0
      %v680 = vadd.f32 0.0, %v679
      %v681 = vpop.f32.mrf.mxu0
      %v682 = vpop.f32.mrf.mxu0
      %v683 = vadd.f32 0.0, %v682
      %v684 = vpop.f32.mrf.mxu0
      %685 = vmatprep.mubr.bf16.mxu0 0
      %686 = vmatmul.mubr.bf16.gmra.mxu0 %v615
      %v687 = vpop.f32.mrf.mxu0
      %v688 = vadd.f32 0.0, %v687
      %v689 = vpop.f32.mrf.mxu0
      %v690 = vpop.f32.mrf.mxu0
      %v691 = vadd.f32 0.0, %v690
      %v692 = vpop.f32.mrf.mxu0
      %693 = vmatprep.mubr.bf16.mxu0 0
      %694 = vmatmul.mubr.bf16.gmra.mxu0 %v618
      %v695 = vpop.f32.mrf.mxu0
      %v696 = vadd.f32 0.0, %v695
      %v697 = vpop.f32.mrf.mxu0
      %v698 = vpop.f32.mrf.mxu0
      %v699 = vadd.f32 0.0, %v698
      %v700 = vpop.f32.mrf.mxu0
      %701 = vmatprep.mubr.bf16.mxu0 0
      %702 = vmatmul.mubr.bf16.gmra.mxu0 %v621
      %v703 = vpop.f32.mrf.mxu0
      %v704 = vadd.f32 0.0, %v703
      %v705 = vpop.f32.mrf.mxu0
      %v706 = vpop.f32.mrf.mxu0
      %v707 = vadd.f32 0.0, %v706
      %v708 = vpop.f32.mrf.mxu0
      %709 = vmatprep.mubr.bf16.mxu0 0
      %710 = vmatmul.mubr.bf16.gmra.mxu0 %v624
      %v711 = vpop.f32.mrf.mxu0
      %v712 = vadd.f32 0.0, %v711
      %v713 = vpop.f32.mrf.mxu0
      %v714 = vpop.f32.mrf.mxu0
      %v715 = vadd.f32 0.0, %v714
      %v716 = vpop.f32.mrf.mxu0
      %717 = vmatprep.mubr.bf16.mxu0 0
      %718 = vmatmul.mubr.bf16.gmra.mxu0 %v627
      %v719 = vpop.f32.mrf.mxu0
      %v720 = vadd.f32 0.0, %v719
      %v721 = vpop.f32.mrf.mxu0
      %v722 = vpop.f32.mrf.mxu0
      %v723 = vadd.f32 0.0, %v722
      %v724 = vpop.f32.mrf.mxu0
      %725 = vdwg.mxu0
      %v734 = vunpack.c.l.b16 %v540
      %v735 = vunpack.c.l.b16 %v541
      %v736 = vunpack.c.l.b16 %v542
      %v737 = vunpack.c.l.b16 %v543
      %v738 = vunpack.c.l.b16 %v544
      %v739 = vunpack.c.l.b16 %v545
      %v740 = vunpack.c.l.b16 %v546
      %v741 = vunpack.c.l.b16 %v547
      %v742 = vpack.c.b16 %v735, %v734
      %v743 = vpack.c.b16 %v737, %v736
      %v744 = vpack.c.b16 %v739, %v738
      %v745 = vpack.c.b16 %v741, %v740
      %v751 = vsel %vm604, %v532, 0
      %v754 = vsel %vm604, %v533, 0
      %v757 = vsel %vm604, %v534, 0
      %v760 = vsel %vm604, %v535, 0
      %v763 = vsel %vm604, %v536, 0
      %v766 = vsel %vm604, %v537, 0
      %v769 = vsel %vm604, %v538, 0
      %v772 = vsel %vm604, %v539, 0
      %774 = vmatprep.subr.bf16.mxu0 0
      %775 = vmatpush1.bf16.msra.mxu0 0
      %776 = vmatprep.subr.bf16.mxu0 0
      %777 = vmatpush1.bf16.msra.mxu0 0
      %778 = vmatprep.subr.bf16.mxu0 0
      %779 = vmatpush1.bf16.msra.mxu0 0
      %780 = vmatprep.subr.bf16.mxu0 0
      %781 = vmatpush1.bf16.msra.mxu0 0
      %782 = vmatprep.subr.bf16.mxu0 0
      %783 = vmatpush1.bf16.msra.mxu0 %v745
      %784 = vmatprep.subr.bf16.mxu0 0
      %785 = vmatpush1.bf16.msra.mxu0 %v744
      %786 = vmatprep.subr.bf16.mxu0 0
      %787 = vmatpush1.bf16.msra.mxu0 %v743
      %788 = vmatprep.subr.bf16.mxu0 0
      %789 = vmatpush1.bf16.msra.mxu0 %v742
      %790 = vmatprep.subr.bf16.mxu0 0
      %791 = vmatpush2.bf16.msra.mxu0 0
      %792 = vmatprep.subr.bf16.mxu0 0
      %793 = vmatpush2.bf16.msra.mxu0 0
      %794 = vmatprep.subr.bf16.mxu0 0
      %795 = vmatpush2.bf16.msra.mxu0 0
      %796 = vmatprep.subr.bf16.mxu0 0
      %797 = vmatpush2.bf16.msra.mxu0 0
      %798 = vmatprep.subr.bf16.mxu0 0
      %799 = vmatpush2.bf16.msra.mxu0 0
      %800 = vmatprep.subr.bf16.mxu0 0
      %801 = vmatpush2.bf16.msra.mxu0 0
      %802 = vmatprep.subr.bf16.mxu0 0
      %803 = vmatpush2.bf16.msra.mxu0 0
      %804 = vmatprep.subr.bf16.mxu0 0
      %805 = vmatpush2.bf16.msra.mxu0 0
      %806 = vmatprep.mubr.bf16.mxu0 0
      %807 = vmatmul.mubr.bf16.gmra.mxu0 %v751
      %v808 = vpop.f32.mrf.mxu0
      %v809 = vadd.f32 %v664, %v808
      %v810 = vpop.f32.mrf.mxu0
      %v811 = vpop.f32.mrf.mxu0
      %v812 = vadd.f32 %v667, %v811
      %v813 = vpop.f32.mrf.mxu0
      %814 = vmatprep.mubr.bf16.mxu0 0
      %815 = vmatmul.mubr.bf16.gmra.mxu0 %v754
      %v816 = vpop.f32.mrf.mxu0
      %v817 = vadd.f32 %v672, %v816
      %v818 = vpop.f32.mrf.mxu0
      %v819 = vpop.f32.mrf.mxu0
      %v820 = vadd.f32 %v675, %v819
      %v821 = vpop.f32.mrf.mxu0
      %822 = vmatprep.mubr.bf16.mxu0 0
      %823 = vmatmul.mubr.bf16.gmra.mxu0 %v757
      %v824 = vpop.f32.mrf.mxu0
      %v825 = vadd.f32 %v680, %v824
      %v826 = vpop.f32.mrf.mxu0
      %v827 = vpop.f32.mrf.mxu0
      %v828 = vadd.f32 %v683, %v827
      %v829 = vpop.f32.mrf.mxu0
      %830 = vmatprep.mubr.bf16.mxu0 0
      %831 = vmatmul.mubr.bf16.gmra.mxu0 %v760
      %v832 = vpop.f32.mrf.mxu0
      %v833 = vadd.f32 %v688, %v832
      %v834 = vpop.f32.mrf.mxu0
      %v835 = vpop.f32.mrf.mxu0
      %v836 = vadd.f32 %v691, %v835
      %v837 = vpop.f32.mrf.mxu0
      %838 = vmatprep.mubr.bf16.mxu0 0
      %839 = vmatmul.mubr.bf16.gmra.mxu0 %v763
      %v840 = vpop.f32.mrf.mxu0
      %v841 = vadd.f32 %v696, %v840
      %v842 = vpop.f32.mrf.mxu0
      %v843 = vpop.f32.mrf.mxu0
      %v844 = vadd.f32 %v699, %v843
      %v845 = vpop.f32.mrf.mxu0
      %846 = vmatprep.mubr.bf16.mxu0 0
      %847 = vmatmul.mubr.bf16.gmra.mxu0 %v766
      %v848 = vpop.f32.mrf.mxu0
      %v849 = vadd.f32 %v704, %v848
      %v850 = vpop.f32.mrf.mxu0
      %v851 = vpop.f32.mrf.mxu0
      %v852 = vadd.f32 %v707, %v851
      %v853 = vpop.f32.mrf.mxu0
      %854 = vmatprep.mubr.bf16.mxu0 0
      %855 = vmatmul.mubr.bf16.gmra.mxu0 %v769
      %v856 = vpop.f32.mrf.mxu0
      %v857 = vadd.f32 %v712, %v856
      %v858 = vpop.f32.mrf.mxu0
      %v859 = vpop.f32.mrf.mxu0
      %v860 = vadd.f32 %v715, %v859
      %v861 = vpop.f32.mrf.mxu0
      %862 = vmatprep.mubr.bf16.mxu0 0
      %863 = vmatmul.mubr.bf16.gmra.mxu0 %v772
      %v864 = vpop.f32.mrf.mxu0
      %v865 = vadd.f32 %v720, %v864
      %v866 = vpop.f32.mrf.mxu0
      %v867 = vpop.f32.mrf.mxu0
      %v868 = vadd.f32 %v723, %v867
      %v869 = vpop.f32.mrf.mxu0
      %870 = vdwg.mxu0
      %872 = vset.pattern.permute.xlu0 0
      %873 = vperm.xlu0 %872, %v468
      %v874 = vpop.permute.xlu0 %873
      %877 = vset.pattern.permute.xlu0 0
      %878 = vperm.xlu0 %877, %v469
      %v879 = vpop.permute.xlu0 %878
      %882 = vset.pattern.permute.xlu0 0
      %883 = vperm.xlu0 %882, %v470
      %v884 = vpop.permute.xlu0 %883
      %887 = vset.pattern.permute.xlu0 0
      %888 = vperm.xlu0 %887, %v471
      %v889 = vpop.permute.xlu0 %888
      %892 = vset.pattern.permute.xlu0 0
      %893 = vperm.xlu0 %892, %v472
      %v894 = vpop.permute.xlu0 %893
      %897 = vset.pattern.permute.xlu0 0
      %898 = vperm.xlu0 %897, %v473
      %v899 = vpop.permute.xlu0 %898
      %902 = vset.pattern.permute.xlu0 0
      %903 = vperm.xlu0 %902, %v474
      %v904 = vpop.permute.xlu0 %903
      %907 = vset.pattern.permute.xlu0 0
      %908 = vperm.xlu0 %907, %v475
      %v909 = vpop.permute.xlu0 %908
      %912 = vset.pattern.permute.xlu0 0
      %913 = vperm.xlu0 %912, %v476
      %v914 = vpop.permute.xlu0 %913
      %917 = vset.pattern.permute.xlu0 0
      %918 = vperm.xlu0 %917, %v477
      %v919 = vpop.permute.xlu0 %918
      %922 = vset.pattern.permute.xlu0 0
      %923 = vperm.xlu0 %922, %v478
      %v924 = vpop.permute.xlu0 %923
      %927 = vset.pattern.permute.xlu0 0
      %928 = vperm.xlu0 %927, %v479
      %v929 = vpop.permute.xlu0 %928
      %932 = vset.pattern.permute.xlu0 0
      %933 = vperm.xlu0 %932, %v480
      %v934 = vpop.permute.xlu0 %933
      %937 = vset.pattern.permute.xlu0 0
      %938 = vperm.xlu0 %937, %v481
      %v939 = vpop.permute.xlu0 %938
      %942 = vset.pattern.permute.xlu0 0
      %943 = vperm.xlu0 %942, %v482
      %v944 = vpop.permute.xlu0 %943
      %947 = vset.pattern.permute.xlu0 0
      %948 = vperm.xlu0 %947, %v483
      %v949 = vpop.permute.xlu0 %948
      %v951 = vlaneseq
      %v952 = vshrl.u32 %v951, 7
      %v953 = vsub.s32 3, %v952
      %v954 = vrot.slane %v466, %v953
      %v955 = vmul.f32 %v874, %v954
      %v956 = vmul.f32 %v879, %v954
      %v957 = vmul.f32 %v884, %v954
      %v958 = vmul.f32 %v889, %v954
      %v959 = vmul.f32 %v894, %v954
      %v960 = vmul.f32 %v899, %v954
      %v961 = vmul.f32 %v904, %v954
      %v962 = vmul.f32 %v909, %v954
      %v963 = vmul.f32 %v914, %v954
      %v964 = vmul.f32 %v919, %v954
      %v965 = vmul.f32 %v924, %v954
      %v966 = vmul.f32 %v929, %v954
      %v967 = vmul.f32 %v934, %v954
      %v968 = vmul.f32 %v939, %v954
      %v969 = vmul.f32 %v944, %v954
      %v970 = vmul.f32 %v949, %v954
      %971 = vset.pattern.permute.xlu0 1
      %972 = vperm.xlu0 %971, %v468
      %v973 = vpop.permute.xlu0 %972
      %975 = vset.pattern.permute.xlu0 1
      %976 = vperm.xlu0 %975, %v469
      %v977 = vpop.permute.xlu0 %976
      %979 = vset.pattern.permute.xlu0 1
      %980 = vperm.xlu0 %979, %v470
      %v981 = vpop.permute.xlu0 %980
      %983 = vset.pattern.permute.xlu0 1
      %984 = vperm.xlu0 %983, %v471
      %v985 = vpop.permute.xlu0 %984
      %987 = vset.pattern.permute.xlu0 1
      %988 = vperm.xlu0 %987, %v472
      %v989 = vpop.permute.xlu0 %988
      %991 = vset.pattern.permute.xlu0 1
      %992 = vperm.xlu0 %991, %v473
      %v993 = vpop.permute.xlu0 %992
      %995 = vset.pattern.permute.xlu0 1
      %996 = vperm.xlu0 %995, %v474
      %v997 = vpop.permute.xlu0 %996
      %999 = vset.pattern.permute.xlu0 1
      %1000 = vperm.xlu0 %999, %v475
      %v1001 = vpop.permute.xlu0 %1000
      %1003 = vset.pattern.permute.xlu0 1
      %1004 = vperm.xlu0 %1003, %v476
      %v1005 = vpop.permute.xlu0 %1004
      %1007 = vset.pattern.permute.xlu0 1
      %1008 = vperm.xlu0 %1007, %v477
      %v1009 = vpop.permute.xlu0 %1008
      %1011 = vset.pattern.permute.xlu0 1
      %1012 = vperm.xlu0 %1011, %v478
      %v1013 = vpop.permute.xlu0 %1012
      %1015 = vset.pattern.permute.xlu0 1
      %1016 = vperm.xlu0 %1015, %v479
      %v1017 = vpop.permute.xlu0 %1016
      %1019 = vset.pattern.permute.xlu0 1
      %1020 = vperm.xlu0 %1019, %v480
      %v1021 = vpop.permute.xlu0 %1020
      %1023 = vset.pattern.permute.xlu0 1
      %1024 = vperm.xlu0 %1023, %v481
      %v1025 = vpop.permute.xlu0 %1024
      %1027 = vset.pattern.permute.xlu0 1
      %1028 = vperm.xlu0 %1027, %v482
      %v1029 = vpop.permute.xlu0 %1028
      %1031 = vset.pattern.permute.xlu0 1
      %1032 = vperm.xlu0 %1031, %v483
      %v1033 = vpop.permute.xlu0 %1032
      %v1035 = vlaneseq
      %v1036 = vshrl.u32 %v1035, 7
      %v1037 = vsub.s32 4, %v1036
      %v1038 = vrot.slane %v466, %v1037
      %v1039 = vmul.f32 %v973, %v1038
      %v1040 = vmul.f32 %v977, %v1038
      %v1041 = vmul.f32 %v981, %v1038
      %v1042 = vmul.f32 %v985, %v1038
      %v1043 = vmul.f32 %v989, %v1038
      %v1044 = vmul.f32 %v993, %v1038
      %v1045 = vmul.f32 %v997, %v1038
      %v1046 = vmul.f32 %v1001, %v1038
      %v1047 = vmul.f32 %v1005, %v1038
      %v1048 = vmul.f32 %v1009, %v1038
      %v1049 = vmul.f32 %v1013, %v1038
      %v1050 = vmul.f32 %v1017, %v1038
      %v1051 = vmul.f32 %v1021, %v1038
      %v1052 = vmul.f32 %v1025, %v1038
      %v1053 = vmul.f32 %v1029, %v1038
      %v1054 = vmul.f32 %v1033, %v1038
      %v1055 = vadd.f32 %v955, %v1039
      %v1056 = vadd.f32 %v956, %v1040
      %v1057 = vadd.f32 %v957, %v1041
      %v1058 = vadd.f32 %v958, %v1042
      %v1059 = vadd.f32 %v959, %v1043
      %v1060 = vadd.f32 %v960, %v1044
      %v1061 = vadd.f32 %v961, %v1045
      %v1062 = vadd.f32 %v962, %v1046
      %v1063 = vadd.f32 %v963, %v1047
      %v1064 = vadd.f32 %v964, %v1048
      %v1065 = vadd.f32 %v965, %v1049
      %v1066 = vadd.f32 %v966, %v1050
      %v1067 = vadd.f32 %v967, %v1051
      %v1068 = vadd.f32 %v968, %v1052
      %v1069 = vadd.f32 %v969, %v1053
      %v1070 = vadd.f32 %v970, %v1054
      %v1071 = vadd.f32 %v1055, %v809
      %v1072 = vadd.f32 %v1056, %v812
      %v1073 = vadd.f32 %v1057, %v817
      %v1074 = vadd.f32 %v1058, %v820
      %v1075 = vadd.f32 %v1059, %v825
      %v1076 = vadd.f32 %v1060, %v828
      %v1077 = vadd.f32 %v1061, %v833
      %v1078 = vadd.f32 %v1062, %v836
      %v1079 = vadd.f32 %v1063, %v841
      %v1080 = vadd.f32 %v1064, %v844
      %v1081 = vadd.f32 %v1065, %v849
      %v1082 = vadd.f32 %v1066, %v852
      %v1083 = vadd.f32 %v1067, %v857
      %v1084 = vadd.f32 %v1068, %v860
      %v1085 = vadd.f32 %v1069, %v865
      %v1086 = vadd.f32 %v1070, %v868
      %v1087 = vlaneseq
      %v1088 = vshrl.u32 %v1087, 7
      %v1089 = vsub.s32 1, %v1088
      %v1090 = vrot.slane %v466, %v1089
      %v1091 = vadd.f32 %v1071, %v1090
      %v1092 = vadd.f32 %v1072, %v1090
      %v1093 = vadd.f32 %v1073, %v1090
      %v1094 = vadd.f32 %v1074, %v1090
      %v1095 = vadd.f32 %v1075, %v1090
      %v1096 = vadd.f32 %v1076, %v1090
      %v1097 = vadd.f32 %v1077, %v1090
      %v1098 = vadd.f32 %v1078, %v1090
      %v1099 = vadd.f32 %v1079, %v1090
      %v1100 = vadd.f32 %v1080, %v1090
      %v1101 = vadd.f32 %v1081, %v1090
      %v1102 = vadd.f32 %v1082, %v1090
      %v1103 = vadd.f32 %v1083, %v1090
      %v1104 = vadd.f32 %v1084, %v1090
      %v1105 = vadd.f32 %v1085, %v1090
      %v1106 = vadd.f32 %v1086, %v1090
      %v1107 = vmax.f32 %v1091, 0.0
      %v1108 = vmax.f32 %v1092, 0.0
      %v1109 = vmax.f32 %v1093, 0.0
      %v1110 = vmax.f32 %v1094, 0.0
      %v1111 = vmax.f32 %v1095, 0.0
      %v1112 = vmax.f32 %v1096, 0.0
      %v1113 = vmax.f32 %v1097, 0.0
      %v1114 = vmax.f32 %v1098, 0.0
      %v1115 = vmax.f32 %v1099, 0.0
      %v1116 = vmax.f32 %v1100, 0.0
      %v1117 = vmax.f32 %v1101, 0.0
      %v1118 = vmax.f32 %v1102, 0.0
      %v1119 = vmax.f32 %v1103, 0.0
      %v1120 = vmax.f32 %v1104, 0.0
      %v1121 = vmax.f32 %v1105, 0.0
      %v1122 = vmax.f32 %v1106, 0.0
      %v1123 = vpack.c.bf16 %v1108, %v1107
      %v1124 = vpack.c.bf16 %v1110, %v1109
      %v1125 = vpack.c.bf16 %v1112, %v1111
      %v1126 = vpack.c.bf16 %v1114, %v1113
      %v1127 = vpack.c.bf16 %v1116, %v1115
      %v1128 = vpack.c.bf16 %v1118, %v1117
      %v1129 = vpack.c.bf16 %v1120, %v1119
      %v1130 = vpack.c.bf16 %v1122, %v1121
      %v1131 = vld [vmem:[%s6] sm:$0xff]
      %v1132 = vld [vmem:[%s6 + $0x8] sm:$0xff]
      %v1133 = vld [vmem:[%s6 + $0x10] sm:$0xff]
      %v1134 = vld [vmem:[%s6 + $0x18] sm:$0xff]
      %v1135 = vld [vmem:[%s6 + $0x20] sm:$0xff]
      %v1136 = vld [vmem:[%s6 + $0x28] sm:$0xff]
      %v1137 = vld [vmem:[%s6 + $0x30] sm:$0xff]
      %v1138 = vld [vmem:[%s6 + $0x38] sm:$0xff]
      %v1139 = vpack.c.bf16 %v485, %v484
      %v1140 = vpack.c.bf16 %v487, %v486
      %v1141 = vpack.c.bf16 %v489, %v488
      %v1142 = vpack.c.bf16 %v491, %v490
      %v1143 = vpack.c.bf16 %v493, %v492
      %v1144 = vpack.c.bf16 %v495, %v494
      %v1145 = vpack.c.bf16 %v497, %v496
      %v1146 = vpack.c.bf16 %v499, %v498
      %v1147 = vld [vmem:[%s6 + $0x40] sm:$0xff]
      %v1148 = vld [vmem:[%s6 + $0x48] sm:$0xff]
      %v1149 = vld [vmem:[%s6 + $0x50] sm:$0xff]
      %v1150 = vld [vmem:[%s6 + $0x58] sm:$0xff]
      %v1151 = vld [vmem:[%s6 + $0x60] sm:$0xff]
      %v1152 = vld [vmem:[%s6 + $0x68] sm:$0xff]
      %v1153 = vld [vmem:[%s6 + $0x70] sm:$0xff]
      %v1154 = vld [vmem:[%s6 + $0x78] sm:$0xff]
      %v1163 = vunpack.c.l.b16 %v1147
      %v1164 = vunpack.c.h.b16 %v1147
      %v1165 = vunpack.c.l.b16 %v1148
      %v1166 = vunpack.c.h.b16 %v1148
      %v1167 = vunpack.c.l.b16 %v1149
      %v1168 = vunpack.c.h.b16 %v1149
      %v1169 = vunpack.c.l.b16 %v1150
      %v1170 = vunpack.c.h.b16 %v1150
      %v1171 = vunpack.c.l.b16 %v1151
      %v1172 = vunpack.c.h.b16 %v1151
      %v1173 = vunpack.c.l.b16 %v1152
      %v1174 = vunpack.c.h.b16 %v1152
      %v1175 = vunpack.c.l.b16 %v1153
      %v1176 = vunpack.c.h.b16 %v1153
      %v1177 = vunpack.c.l.b16 %v1154
      %v1178 = vunpack.c.h.b16 %v1154
      %v1179 = vpack.c.b16 %v1165, %v1163
      %v1180 = vpack.c.b16 %v1166, %v1164
      %v1181 = vpack.c.b16 %v1169, %v1167
      %v1182 = vpack.c.b16 %v1170, %v1168
      %v1183 = vpack.c.b16 %v1173, %v1171
      %v1184 = vpack.c.b16 %v1174, %v1172
      %v1185 = vpack.c.b16 %v1177, %v1175
      %v1186 = vpack.c.b16 %v1178, %v1176
      %v1196 = vsel %vm604, %v1139, 0
      %v1199 = vsel %vm604, %v1140, 0
      %v1202 = vsel %vm604, %v1141, 0
      %v1205 = vsel %vm604, %v1142, 0
      %v1208 = vsel %vm604, %v1143, 0
      %v1211 = vsel %vm604, %v1144, 0
      %v1214 = vsel %vm604, %v1145, 0
      %v1217 = vsel %vm604, %v1146, 0
      %1219 = vmatprep.subr.bf16.mxu0 0
      %1220 = vmatpush1.bf16.msra.mxu0 0
      %1221 = vmatprep.subr.bf16.mxu0 0
      %1222 = vmatpush1.bf16.msra.mxu0 0
      %1223 = vmatprep.subr.bf16.mxu0 0
      %1224 = vmatpush1.bf16.msra.mxu0 0
      %1225 = vmatprep.subr.bf16.mxu0 0
      %1226 = vmatpush1.bf16.msra.mxu0 0
      %1227 = vmatprep.subr.bf16.mxu0 %v1186
      %1228 = vmatpush1.bf16.msra.mxu0 %v1185
      %1229 = vmatprep.subr.bf16.mxu0 %v1184
      %1230 = vmatpush1.bf16.msra.mxu0 %v1183
      %1231 = vmatprep.subr.bf16.mxu0 %v1182
      %1232 = vmatpush1.bf16.msra.mxu0 %v1181
      %1233 = vmatprep.subr.bf16.mxu0 %v1180
      %1234 = vmatpush1.bf16.msra.mxu0 %v1179
      %1235 = vmatprep.subr.bf16.mxu0 0
      %1236 = vmatpush2.bf16.msra.mxu0 0
      %1237 = vmatprep.subr.bf16.mxu0 0
      %1238 = vmatpush2.bf16.msra.mxu0 0
      %1239 = vmatprep.subr.bf16.mxu0 0
      %1240 = vmatpush2.bf16.msra.mxu0 0
      %1241 = vmatprep.subr.bf16.mxu0 0
      %1242 = vmatpush2.bf16.msra.mxu0 0
      %1243 = vmatprep.subr.bf16.mxu0 0
      %1244 = vmatpush2.bf16.msra.mxu0 0
      %1245 = vmatprep.subr.bf16.mxu0 0
      %1246 = vmatpush2.bf16.msra.mxu0 0
      %1247 = vmatprep.subr.bf16.mxu0 0
      %1248 = vmatpush2.bf16.msra.mxu0 0
      %1249 = vmatprep.subr.bf16.mxu0 0
      %1250 = vmatpush2.bf16.msra.mxu0 0
      %1251 = vmatprep.mubr.bf16.mxu0 0
      %1252 = vmatmul.mubr.bf16.gmra.mxu0 %v1196
      %v1253 = vpop.f32.mrf.mxu0
      %v1254 = vadd.f32 0.0, %v1253
      %v1255 = vpop.f32.mrf.mxu0
      %v1256 = vadd.f32 0.0, %v1255
      %v1257 = vpop.f32.mrf.mxu0
      %v1258 = vadd.f32 0.0, %v1257
      %v1259 = vpop.f32.mrf.mxu0
      %v1260 = vadd.f32 0.0, %v1259
      %1261 = vmatprep.mubr.bf16.mxu0 0
      %1262 = vmatmul.mubr.bf16.gmra.mxu0 %v1199
      %v1263 = vpop.f32.mrf.mxu0
      %v1264 = vadd.f32 0.0, %v1263
      %v1265 = vpop.f32.mrf.mxu0
      %v1266 = vadd.f32 0.0, %v1265
      %v1267 = vpop.f32.mrf.mxu0
      %v1268 = vadd.f32 0.0, %v1267
      %v1269 = vpop.f32.mrf.mxu0
      %v1270 = vadd.f32 0.0, %v1269
      %1271 = vmatprep.mubr.bf16.mxu0 0
      %1272 = vmatmul.mubr.bf16.gmra.mxu0 %v1202
      %v1273 = vpop.f32.mrf.mxu0
      %v1274 = vadd.f32 0.0, %v1273
      %v1275 = vpop.f32.mrf.mxu0
      %v1276 = vadd.f32 0.0, %v1275
      %v1277 = vpop.f32.mrf.mxu0
      %v1278 = vadd.f32 0.0, %v1277
      %v1279 = vpop.f32.mrf.mxu0
      %v1280 = vadd.f32 0.0, %v1279
      %1281 = vmatprep.mubr.bf16.mxu0 0
      %1282 = vmatmul.mubr.bf16.gmra.mxu0 %v1205
      %v1283 = vpop.f32.mrf.mxu0
      %v1284 = vadd.f32 0.0, %v1283
      %v1285 = vpop.f32.mrf.mxu0
      %v1286 = vadd.f32 0.0, %v1285
      %v1287 = vpop.f32.mrf.mxu0
      %v1288 = vadd.f32 0.0, %v1287
      %v1289 = vpop.f32.mrf.mxu0
      %v1290 = vadd.f32 0.0, %v1289
      %1291 = vmatprep.mubr.bf16.mxu0 0
      %1292 = vmatmul.mubr.bf16.gmra.mxu0 %v1208
      %v1293 = vpop.f32.mrf.mxu0
      %v1294 = vadd.f32 0.0, %v1293
      %v1295 = vpop.f32.mrf.mxu0
      %v1296 = vadd.f32 0.0, %v1295
      %v1297 = vpop.f32.mrf.mxu0
      %v1298 = vadd.f32 0.0, %v1297
      %v1299 = vpop.f32.mrf.mxu0
      %v1300 = vadd.f32 0.0, %v1299
      %1301 = vmatprep.mubr.bf16.mxu0 0
      %1302 = vmatmul.mubr.bf16.gmra.mxu0 %v1211
      %v1303 = vpop.f32.mrf.mxu0
      %v1304 = vadd.f32 0.0, %v1303
      %v1305 = vpop.f32.mrf.mxu0
      %v1306 = vadd.f32 0.0, %v1305
      %v1307 = vpop.f32.mrf.mxu0
      %v1308 = vadd.f32 0.0, %v1307
      %v1309 = vpop.f32.mrf.mxu0
      %v1310 = vadd.f32 0.0, %v1309
      %1311 = vmatprep.mubr.bf16.mxu0 0
      %1312 = vmatmul.mubr.bf16.gmra.mxu0 %v1214
      %v1313 = vpop.f32.mrf.mxu0
      %v1314 = vadd.f32 0.0, %v1313
      %v1315 = vpop.f32.mrf.mxu0
      %v1316 = vadd.f32 0.0, %v1315
      %v1317 = vpop.f32.mrf.mxu0
      %v1318 = vadd.f32 0.0, %v1317
      %v1319 = vpop.f32.mrf.mxu0
      %v1320 = vadd.f32 0.0, %v1319
      %1321 = vmatprep.mubr.bf16.mxu0 0
      %1322 = vmatmul.mubr.bf16.gmra.mxu0 %v1217
      %v1323 = vpop.f32.mrf.mxu0
      %v1324 = vadd.f32 0.0, %v1323
      %v1325 = vpop.f32.mrf.mxu0
      %v1326 = vadd.f32 0.0, %v1325
      %v1327 = vpop.f32.mrf.mxu0
      %v1328 = vadd.f32 0.0, %v1327
      %v1329 = vpop.f32.mrf.mxu0
      %v1330 = vadd.f32 0.0, %v1329
      %1331 = vdwg.mxu0
      %v1340 = vunpack.c.l.b16 %v1131
      %v1341 = vunpack.c.h.b16 %v1131
      %v1342 = vunpack.c.l.b16 %v1132
      %v1343 = vunpack.c.h.b16 %v1132
      %v1344 = vunpack.c.l.b16 %v1133
      %v1345 = vunpack.c.h.b16 %v1133
      %v1346 = vunpack.c.l.b16 %v1134
      %v1347 = vunpack.c.h.b16 %v1134
      %v1348 = vunpack.c.l.b16 %v1135
      %v1349 = vunpack.c.h.b16 %v1135
      %v1350 = vunpack.c.l.b16 %v1136
      %v1351 = vunpack.c.h.b16 %v1136
      %v1352 = vunpack.c.l.b16 %v1137
      %v1353 = vunpack.c.h.b16 %v1137
      %v1354 = vunpack.c.l.b16 %v1138
      %v1355 = vunpack.c.h.b16 %v1138
      %v1356 = vpack.c.b16 %v1342, %v1340
      %v1357 = vpack.c.b16 %v1343, %v1341
      %v1358 = vpack.c.b16 %v1346, %v1344
      %v1359 = vpack.c.b16 %v1347, %v1345
      %v1360 = vpack.c.b16 %v1350, %v1348
      %v1361 = vpack.c.b16 %v1351, %v1349
      %v1362 = vpack.c.b16 %v1354, %v1352
      %v1363 = vpack.c.b16 %v1355, %v1353
      %v1373 = vsel %vm604, %v1123, 0
      %v1376 = vsel %vm604, %v1124, 0
      %v1379 = vsel %vm604, %v1125, 0
      %v1382 = vsel %vm604, %v1126, 0
      %v1385 = vsel %vm604, %v1127, 0
      %v1388 = vsel %vm604, %v1128, 0
      %v1391 = vsel %vm604, %v1129, 0
      %v1394 = vsel %vm604, %v1130, 0
      %1396 = vmatprep.subr.bf16.mxu0 0
      %1397 = vmatpush1.bf16.msra.mxu0 0
      %1398 = vmatprep.subr.bf16.mxu0 0
      %1399 = vmatpush1.bf16.msra.mxu0 0
      %1400 = vmatprep.subr.bf16.mxu0 0
      %1401 = vmatpush1.bf16.msra.mxu0 0
      %1402 = vmatprep.subr.bf16.mxu0 0
      %1403 = vmatpush1.bf16.msra.mxu0 0
      %1404 = vmatprep.subr.bf16.mxu0 %v1363
      %1405 = vmatpush1.bf16.msra.mxu0 %v1362
      %1406 = vmatprep.subr.bf16.mxu0 %v1361
      %1407 = vmatpush1.bf16.msra.mxu0 %v1360
      %1408 = vmatprep.subr.bf16.mxu0 %v1359
      %1409 = vmatpush1.bf16.msra.mxu0 %v1358
      %1410 = vmatprep.subr.bf16.mxu0 %v1357
      %1411 = vmatpush1.bf16.msra.mxu0 %v1356
      %1412 = vmatprep.subr.bf16.mxu0 0
      %1413 = vmatpush2.bf16.msra.mxu0 0
      %1414 = vmatprep.subr.bf16.mxu0 0
      %1415 = vmatpush2.bf16.msra.mxu0 0
      %1416 = vmatprep.subr.bf16.mxu0 0
      %1417 = vmatpush2.bf16.msra.mxu0 0
      %1418 = vmatprep.subr.bf16.mxu0 0
      %1419 = vmatpush2.bf16.msra.mxu0 0
      %1420 = vmatprep.subr.bf16.mxu0 0
      %1421 = vmatpush2.bf16.msra.mxu0 0
      %1422 = vmatprep.subr.bf16.mxu0 0
      %1423 = vmatpush2.bf16.msra.mxu0 0
      %1424 = vmatprep.subr.bf16.mxu0 0
      %1425 = vmatpush2.bf16.msra.mxu0 0
      %1426 = vmatprep.subr.bf16.mxu0 0
      %1427 = vmatpush2.bf16.msra.mxu0 0
      %1428 = vmatprep.mubr.bf16.mxu0 0
      %1429 = vmatmul.mubr.bf16.gmra.mxu0 %v1373
      %v1430 = vpop.f32.mrf.mxu0
      %v1431 = vadd.f32 %v1254, %v1430
      %v1432 = vpop.f32.mrf.mxu0
      %v1433 = vadd.f32 %v1256, %v1432
      %v1434 = vpop.f32.mrf.mxu0
      %v1435 = vadd.f32 %v1258, %v1434
      %v1436 = vpop.f32.mrf.mxu0
      %v1437 = vadd.f32 %v1260, %v1436
      %1438 = vmatprep.mubr.bf16.mxu0 0
      %1439 = vmatmul.mubr.bf16.gmra.mxu0 %v1376
      %v1440 = vpop.f32.mrf.mxu0
      %v1441 = vadd.f32 %v1264, %v1440
      %v1442 = vpop.f32.mrf.mxu0
      %v1443 = vadd.f32 %v1266, %v1442
      %v1444 = vpop.f32.mrf.mxu0
      %v1445 = vadd.f32 %v1268, %v1444
      %v1446 = vpop.f32.mrf.mxu0
      %v1447 = vadd.f32 %v1270, %v1446
      %1448 = vmatprep.mubr.bf16.mxu0 0
      %1449 = vmatmul.mubr.bf16.gmra.mxu0 %v1379
      %v1450 = vpop.f32.mrf.mxu0
      %v1451 = vadd.f32 %v1274, %v1450
      %v1452 = vpop.f32.mrf.mxu0
      %v1453 = vadd.f32 %v1276, %v1452
      %v1454 = vpop.f32.mrf.mxu0
      %v1455 = vadd.f32 %v1278, %v1454
      %v1456 = vpop.f32.mrf.mxu0
      %v1457 = vadd.f32 %v1280, %v1456
      %1458 = vmatprep.mubr.bf16.mxu0 0
      %1459 = vmatmul.mubr.bf16.gmra.mxu0 %v1382
      %v1460 = vpop.f32.mrf.mxu0
      %v1461 = vadd.f32 %v1284, %v1460
      %v1462 = vpop.f32.mrf.mxu0
      %v1463 = vadd.f32 %v1286, %v1462
      %v1464 = vpop.f32.mrf.mxu0
      %v1465 = vadd.f32 %v1288, %v1464
      %v1466 = vpop.f32.mrf.mxu0
      %v1467 = vadd.f32 %v1290, %v1466
      %1468 = vmatprep.mubr.bf16.mxu0 0
      %1469 = vmatmul.mubr.bf16.gmra.mxu0 %v1385
      %v1470 = vpop.f32.mrf.mxu0
      %v1471 = vadd.f32 %v1294, %v1470
      %v1472 = vpop.f32.mrf.mxu0
      %v1473 = vadd.f32 %v1296, %v1472
      %v1474 = vpop.f32.mrf.mxu0
      %v1475 = vadd.f32 %v1298, %v1474
      %v1476 = vpop.f32.mrf.mxu0
      %v1477 = vadd.f32 %v1300, %v1476
      %1478 = vmatprep.mubr.bf16.mxu0 0
      %1479 = vmatmul.mubr.bf16.gmra.mxu0 %v1388
      %v1480 = vpop.f32.mrf.mxu0
      %v1481 = vadd.f32 %v1304, %v1480
      %v1482 = vpop.f32.mrf.mxu0
      %v1483 = vadd.f32 %v1306, %v1482
      %v1484 = vpop.f32.mrf.mxu0
      %v1485 = vadd.f32 %v1308, %v1484
      %v1486 = vpop.f32.mrf.mxu0
      %v1487 = vadd.f32 %v1310, %v1486
      %1488 = vmatprep.mubr.bf16.mxu0 0
      %1489 = vmatmul.mubr.bf16.gmra.mxu0 %v1391
      %v1490 = vpop.f32.mrf.mxu0
      %v1491 = vadd.f32 %v1314, %v1490
      %v1492 = vpop.f32.mrf.mxu0
      %v1493 = vadd.f32 %v1316, %v1492
      %v1494 = vpop.f32.mrf.mxu0
      %v1495 = vadd.f32 %v1318, %v1494
      %v1496 = vpop.f32.mrf.mxu0
      %v1497 = vadd.f32 %v1320, %v1496
      %1498 = vmatprep.mubr.bf16.mxu0 0
      %1499 = vmatmul.mubr.bf16.gmra.mxu0 %v1394
      %v1500 = vpop.f32.mrf.mxu0
      %v1501 = vadd.f32 %v1324, %v1500
      %v1502 = vpop.f32.mrf.mxu0
      %v1503 = vadd.f32 %v1326, %v1502
      %v1504 = vpop.f32.mrf.mxu0
      %v1505 = vadd.f32 %v1328, %v1504
      %v1506 = vpop.f32.mrf.mxu0
      %v1507 = vadd.f32 %v1330, %v1506
      %1508 = vdwg.mxu0
      %v1509 = vlaneseq
      %v1510 = vshrl.u32 %v1509, 7
      %v1511 = vsub.s32 0, %v1510
      %v1512 = vrot.slane %v466, %v1511
      %v1513 = vlaneseq
      %v1514 = vshrl.u32 %v1513, 7
      %v1515 = vsub.s32 0, %v1514
      %v1516 = vrot.slane %v467, %v1515
      %v1517 = vadd.f32 %v1431, %v1512
      %v1518 = vadd.f32 %v1433, %v1516
      %v1519 = vadd.f32 %v1435, %v1512
      %v1520 = vadd.f32 %v1437, %v1516
      %v1521 = vadd.f32 %v1441, %v1512
      %v1522 = vadd.f32 %v1443, %v1516
      %v1523 = vadd.f32 %v1445, %v1512
      %v1524 = vadd.f32 %v1447, %v1516
      %v1525 = vadd.f32 %v1451, %v1512
      %v1526 = vadd.f32 %v1453, %v1516
      %v1527 = vadd.f32 %v1455, %v1512
      %v1528 = vadd.f32 %v1457, %v1516
      %v1529 = vadd.f32 %v1461, %v1512
      %v1530 = vadd.f32 %v1463, %v1516
      %v1531 = vadd.f32 %v1465, %v1512
      %v1532 = vadd.f32 %v1467, %v1516
      %v1533 = vadd.f32 %v1471, %v1512
      %v1534 = vadd.f32 %v1473, %v1516
      %v1535 = vadd.f32 %v1475, %v1512
      %v1536 = vadd.f32 %v1477, %v1516
      %v1537 = vadd.f32 %v1481, %v1512
      %v1538 = vadd.f32 %v1483, %v1516
      %v1539 = vadd.f32 %v1485, %v1512
      %v1540 = vadd.f32 %v1487, %v1516
      %v1541 = vadd.f32 %v1491, %v1512
      %v1542 = vadd.f32 %v1493, %v1516
      %v1543 = vadd.f32 %v1495, %v1512
      %v1544 = vadd.f32 %v1497, %v1516
      %v1545 = vadd.f32 %v1501, %v1512
      %v1546 = vadd.f32 %v1503, %v1516
      %v1547 = vadd.f32 %v1505, %v1512
      %v1548 = vadd.f32 %v1507, %v1516
      %v1549 = vxor.u32 %v1517, 2147483648
      %v1550 = vxor.u32 %v1519, 2147483648
      %v1551 = vxor.u32 %v1521, 2147483648
      %v1552 = vxor.u32 %v1523, 2147483648
      %v1553 = vxor.u32 %v1525, 2147483648
      %v1554 = vxor.u32 %v1527, 2147483648
      %v1555 = vxor.u32 %v1529, 2147483648
      %v1556 = vxor.u32 %v1531, 2147483648
      %v1557 = vxor.u32 %v1533, 2147483648
      %v1558 = vxor.u32 %v1535, 2147483648
      %v1559 = vxor.u32 %v1537, 2147483648
      %v1560 = vxor.u32 %v1539, 2147483648
      %v1561 = vxor.u32 %v1541, 2147483648
      %v1562 = vxor.u32 %v1543, 2147483648
      %v1563 = vxor.u32 %v1545, 2147483648
      %v1564 = vxor.u32 %v1547, 2147483648
      %v1565 = vmul.f32 %v1549, 1.442695
      %v1566 = vpow.pop %v1565
      %v1567 = vmul.f32 %v1550, 1.442695
      %v1568 = vpow.pop %v1567
      %v1569 = vmul.f32 %v1551, 1.442695
      %v1570 = vpow.pop %v1569
      %v1571 = vmul.f32 %v1552, 1.442695
      %v1572 = vpow.pop %v1571
      %v1573 = vmul.f32 %v1553, 1.442695
      %v1574 = vpow.pop %v1573
      %v1575 = vmul.f32 %v1554, 1.442695
      %v1576 = vpow.pop %v1575
      %v1577 = vmul.f32 %v1555, 1.442695
      %v1578 = vpow.pop %v1577
      %v1579 = vmul.f32 %v1556, 1.442695
      %v1580 = vpow.pop %v1579
      %v1581 = vmul.f32 %v1557, 1.442695
      %v1582 = vpow.pop %v1581
      %v1583 = vmul.f32 %v1558, 1.442695
      %v1584 = vpow.pop %v1583
      %v1585 = vmul.f32 %v1559, 1.442695
      %v1586 = vpow.pop %v1585
      %v1587 = vmul.f32 %v1560, 1.442695
      %v1588 = vpow.pop %v1587
      %v1589 = vmul.f32 %v1561, 1.442695
      %v1590 = vpow.pop %v1589
      %v1591 = vmul.f32 %v1562, 1.442695
      %v1592 = vpow.pop %v1591
      %v1593 = vmul.f32 %v1563, 1.442695
      %v1594 = vpow.pop %v1593
      %v1595 = vmul.f32 %v1564, 1.442695
      %v1596 = vpow.pop %v1595
      %v1597 = vadd.f32 %v1566, 1.0
      %v1598 = vadd.f32 %v1568, 1.0
      %v1599 = vadd.f32 %v1570, 1.0
      %v1600 = vadd.f32 %v1572, 1.0
      %v1601 = vadd.f32 %v1574, 1.0
      %v1602 = vadd.f32 %v1576, 1.0
      %v1603 = vadd.f32 %v1578, 1.0
      %v1604 = vadd.f32 %v1580, 1.0
      %v1605 = vadd.f32 %v1582, 1.0
      %v1606 = vadd.f32 %v1584, 1.0
      %v1607 = vadd.f32 %v1586, 1.0
      %v1608 = vadd.f32 %v1588, 1.0
      %v1609 = vadd.f32 %v1590, 1.0
      %v1610 = vadd.f32 %v1592, 1.0
      %v1611 = vadd.f32 %v1594, 1.0
      %v1612 = vadd.f32 %v1596, 1.0
      %v1613 = vrcp.pop %v1597
      %v1614 = vmul.f32 1.0, %v1613
      %v1615 = vrcp.pop %v1598
      %v1616 = vmul.f32 1.0, %v1615
      %v1617 = vrcp.pop %v1599
      %v1618 = vmul.f32 1.0, %v1617
      %v1619 = vrcp.pop %v1600
      %v1620 = vmul.f32 1.0, %v1619
      %v1621 = vrcp.pop %v1601
      %v1622 = vmul.f32 1.0, %v1621
      %v1623 = vrcp.pop %v1602
      %v1624 = vmul.f32 1.0, %v1623
      %v1625 = vrcp.pop %v1603
      %v1626 = vmul.f32 1.0, %v1625
      %v1627 = vrcp.pop %v1604
      %v1628 = vmul.f32 1.0, %v1627
      %v1629 = vrcp.pop %v1605
      %v1630 = vmul.f32 1.0, %v1629
      %v1631 = vrcp.pop %v1606
      %v1632 = vmul.f32 1.0, %v1631
      %v1633 = vrcp.pop %v1607
      %v1634 = vmul.f32 1.0, %v1633
      %v1635 = vrcp.pop %v1608
      %v1636 = vmul.f32 1.0, %v1635
      %v1637 = vrcp.pop %v1609
      %v1638 = vmul.f32 1.0, %v1637
      %v1639 = vrcp.pop %v1610
      %v1640 = vmul.f32 1.0, %v1639
      %v1641 = vrcp.pop %v1611
      %v1642 = vmul.f32 1.0, %v1641
      %v1643 = vrcp.pop %v1612
      %v1644 = vmul.f32 1.0, %v1643
      %v1645 = vtanh.pop %v1518
      %v1646 = vtanh.pop %v1520
      %v1647 = vtanh.pop %v1522
      %v1648 = vtanh.pop %v1524
      %v1649 = vtanh.pop %v1526
      %v1650 = vtanh.pop %v1528
      %v1651 = vtanh.pop %v1530
      %v1652 = vtanh.pop %v1532
      %v1653 = vtanh.pop %v1534
      %v1654 = vtanh.pop %v1536
      %v1655 = vtanh.pop %v1538
      %v1656 = vtanh.pop %v1540
      %v1657 = vtanh.pop %v1542
      %v1658 = vtanh.pop %v1544
      %v1659 = vtanh.pop %v1546
      %v1660 = vtanh.pop %v1548
      %v1661 = vxor.u32 %v1518, 2147483648
      %v1662 = vxor.u32 %v1520, 2147483648
      %v1663 = vxor.u32 %v1522, 2147483648
      %v1664 = vxor.u32 %v1524, 2147483648
      %v1665 = vxor.u32 %v1526, 2147483648
      %v1666 = vxor.u32 %v1528, 2147483648
      %v1667 = vxor.u32 %v1530, 2147483648
      %v1668 = vxor.u32 %v1532, 2147483648
      %v1669 = vxor.u32 %v1534, 2147483648
      %v1670 = vxor.u32 %v1536, 2147483648
      %v1671 = vxor.u32 %v1538, 2147483648
      %v1672 = vxor.u32 %v1540, 2147483648
      %v1673 = vxor.u32 %v1542, 2147483648
      %v1674 = vxor.u32 %v1544, 2147483648
      %v1675 = vxor.u32 %v1546, 2147483648
      %v1676 = vxor.u32 %v1548, 2147483648
      %v1677 = vmul.f32 %v1661, 1.442695
      %v1678 = vpow.pop %v1677
      %v1679 = vmul.f32 %v1662, 1.442695
      %v1680 = vpow.pop %v1679
      %v1681 = vmul.f32 %v1663, 1.442695
      %v1682 = vpow.pop %v1681
      %v1683 = vmul.f32 %v1664, 1.442695
      %v1684 = vpow.pop %v1683
      %v1685 = vmul.f32 %v1665, 1.442695
      %v1686 = vpow.pop %v1685
      %v1687 = vmul.f32 %v1666, 1.442695
      %v1688 = vpow.pop %v1687
      %v1689 = vmul.f32 %v1667, 1.442695
      %v1690 = vpow.pop %v1689
      %v1691 = vmul.f32 %v1668, 1.442695
      %v1692 = vpow.pop %v1691
      %v1693 = vmul.f32 %v1669, 1.442695
      %v1694 = vpow.pop %v1693
      %v1695 = vmul.f32 %v1670, 1.442695
      %v1696 = vpow.pop %v1695
      %v1697 = vmul.f32 %v1671, 1.442695
      %v1698 = vpow.pop %v1697
      %v1699 = vmul.f32 %v1672, 1.442695
      %v1700 = vpow.pop %v1699
      %v1701 = vmul.f32 %v1673, 1.442695
      %v1702 = vpow.pop %v1701
      %v1703 = vmul.f32 %v1674, 1.442695
      %v1704 = vpow.pop %v1703
      %v1705 = vmul.f32 %v1675, 1.442695
      %v1706 = vpow.pop %v1705
      %v1707 = vmul.f32 %v1676, 1.442695
      %v1708 = vpow.pop %v1707
      %v1709 = vadd.f32 %v1678, 1.0
      %v1710 = vadd.f32 %v1680, 1.0
      %v1711 = vadd.f32 %v1682, 1.0
      %v1712 = vadd.f32 %v1684, 1.0
      %v1713 = vadd.f32 %v1686, 1.0
      %v1714 = vadd.f32 %v1688, 1.0
      %v1715 = vadd.f32 %v1690, 1.0
      %v1716 = vadd.f32 %v1692, 1.0
      %v1717 = vadd.f32 %v1694, 1.0
      %v1718 = vadd.f32 %v1696, 1.0
      %v1719 = vadd.f32 %v1698, 1.0
      %v1720 = vadd.f32 %v1700, 1.0
      %v1721 = vadd.f32 %v1702, 1.0
      %v1722 = vadd.f32 %v1704, 1.0
      %v1723 = vadd.f32 %v1706, 1.0
      %v1724 = vadd.f32 %v1708, 1.0
      %v1725 = vrcp.pop %v1709
      %v1726 = vmul.f32 1.0, %v1725
      %v1727 = vrcp.pop %v1710
      %v1728 = vmul.f32 1.0, %v1727
      %v1729 = vrcp.pop %v1711
      %v1730 = vmul.f32 1.0, %v1729
      %v1731 = vrcp.pop %v1712
      %v1732 = vmul.f32 1.0, %v1731
      %v1733 = vrcp.pop %v1713
      %v1734 = vmul.f32 1.0, %v1733
      %v1735 = vrcp.pop %v1714
      %v1736 = vmul.f32 1.0, %v1735
      %v1737 = vrcp.pop %v1715
      %v1738 = vmul.f32 1.0, %v1737
      %v1739 = vrcp.pop %v1716
      %v1740 = vmul.f32 1.0, %v1739
      %v1741 = vrcp.pop %v1717
      %v1742 = vmul.f32 1.0, %v1741
      %v1743 = vrcp.pop %v1718
      %v1744 = vmul.f32 1.0, %v1743
      %v1745 = vrcp.pop %v1719
      %v1746 = vmul.f32 1.0, %v1745
      %v1747 = vrcp.pop %v1720
      %v1748 = vmul.f32 1.0, %v1747
      %v1749 = vrcp.pop %v1721
      %v1750 = vmul.f32 1.0, %v1749
      %v1751 = vrcp.pop %v1722
      %v1752 = vmul.f32 1.0, %v1751
      %v1753 = vrcp.pop %v1723
      %v1754 = vmul.f32 1.0, %v1753
      %v1755 = vrcp.pop %v1724
      %v1756 = vmul.f32 1.0, %v1755
      %1773 = vrot.lane.b32.xlu0 %v500, 64
      %v1774 = vpop.permute.xlu0 %1773
      %1775 = vrot.lane.b32.xlu0 %v501, 64
      %v1776 = vpop.permute.xlu0 %1775
      %1777 = vrot.lane.b32.xlu0 %v502, 64
      %v1778 = vpop.permute.xlu0 %1777
      %1779 = vrot.lane.b32.xlu0 %v503, 64
      %v1780 = vpop.permute.xlu0 %1779
      %1781 = vrot.lane.b32.xlu0 %v504, 64
      %v1782 = vpop.permute.xlu0 %1781
      %1783 = vrot.lane.b32.xlu0 %v505, 64
      %v1784 = vpop.permute.xlu0 %1783
      %1785 = vrot.lane.b32.xlu0 %v506, 64
      %v1786 = vpop.permute.xlu0 %1785
      %1787 = vrot.lane.b32.xlu0 %v507, 64
      %v1788 = vpop.permute.xlu0 %1787
      %1789 = vrot.lane.b32.xlu0 %v508, 64
      %v1790 = vpop.permute.xlu0 %1789
      %1791 = vrot.lane.b32.xlu0 %v509, 64
      %v1792 = vpop.permute.xlu0 %1791
      %1793 = vrot.lane.b32.xlu0 %v510, 64
      %v1794 = vpop.permute.xlu0 %1793
      %1795 = vrot.lane.b32.xlu0 %v511, 64
      %v1796 = vpop.permute.xlu0 %1795
      %1797 = vrot.lane.b32.xlu0 %v512, 64
      %v1798 = vpop.permute.xlu0 %1797
      %1799 = vrot.lane.b32.xlu0 %v513, 64
      %v1800 = vpop.permute.xlu0 %1799
      %1801 = vrot.lane.b32.xlu0 %v514, 64
      %v1802 = vpop.permute.xlu0 %1801
      %1803 = vrot.lane.b32.xlu0 %v515, 64
      %v1804 = vpop.permute.xlu0 %1803
      %v1821 = vmul.f32 %v1614, %v1774
      %v1822 = vmul.f32 %v1616, %v1776
      %v1823 = vmul.f32 %v1618, %v1778
      %v1824 = vmul.f32 %v1620, %v1780
      %v1825 = vmul.f32 %v1622, %v1782
      %v1826 = vmul.f32 %v1624, %v1784
      %v1827 = vmul.f32 %v1626, %v1786
      %v1828 = vmul.f32 %v1628, %v1788
      %v1829 = vmul.f32 %v1630, %v1790
      %v1830 = vmul.f32 %v1632, %v1792
      %v1831 = vmul.f32 %v1634, %v1794
      %v1832 = vmul.f32 %v1636, %v1796
      %v1833 = vmul.f32 %v1638, %v1798
      %v1834 = vmul.f32 %v1640, %v1800
      %v1835 = vmul.f32 %v1642, %v1802
      %v1836 = vmul.f32 %v1644, %v1804
      %v1837 = vmul.f32 %v1614, %v1645
      %v1838 = vmul.f32 %v1616, %v1646
      %v1839 = vmul.f32 %v1618, %v1647
      %v1840 = vmul.f32 %v1620, %v1648
      %v1841 = vmul.f32 %v1622, %v1649
      %v1842 = vmul.f32 %v1624, %v1650
      %v1843 = vmul.f32 %v1626, %v1651
      %v1844 = vmul.f32 %v1628, %v1652
      %v1845 = vmul.f32 %v1630, %v1653
      %v1846 = vmul.f32 %v1632, %v1654
      %v1847 = vmul.f32 %v1634, %v1655
      %v1848 = vmul.f32 %v1636, %v1656
      %v1849 = vmul.f32 %v1638, %v1657
      %v1850 = vmul.f32 %v1640, %v1658
      %v1851 = vmul.f32 %v1642, %v1659
      %v1852 = vmul.f32 %v1644, %v1660
      %1869 = vrot.lane.b32.xlu0 %v1837, 64
      %v1870 = vpop.permute.xlu0 %1869
      %1871 = vrot.lane.b32.xlu0 %v1838, 64
      %v1872 = vpop.permute.xlu0 %1871
      %1873 = vrot.lane.b32.xlu0 %v1839, 64
      %v1874 = vpop.permute.xlu0 %1873
      %1875 = vrot.lane.b32.xlu0 %v1840, 64
      %v1876 = vpop.permute.xlu0 %1875
      %1877 = vrot.lane.b32.xlu0 %v1841, 64
      %v1878 = vpop.permute.xlu0 %1877
      %1879 = vrot.lane.b32.xlu0 %v1842, 64
      %v1880 = vpop.permute.xlu0 %1879
      %1881 = vrot.lane.b32.xlu0 %v1843, 64
      %v1882 = vpop.permute.xlu0 %1881
      %1883 = vrot.lane.b32.xlu0 %v1844, 64
      %v1884 = vpop.permute.xlu0 %1883
      %1885 = vrot.lane.b32.xlu0 %v1845, 64
      %v1886 = vpop.permute.xlu0 %1885
      %1887 = vrot.lane.b32.xlu0 %v1846, 64
      %v1888 = vpop.permute.xlu0 %1887
      %1889 = vrot.lane.b32.xlu0 %v1847, 64
      %v1890 = vpop.permute.xlu0 %1889
      %1891 = vrot.lane.b32.xlu0 %v1848, 64
      %v1892 = vpop.permute.xlu0 %1891
      %1893 = vrot.lane.b32.xlu0 %v1849, 64
      %v1894 = vpop.permute.xlu0 %1893
      %1895 = vrot.lane.b32.xlu0 %v1850, 64
      %v1896 = vpop.permute.xlu0 %1895
      %1897 = vrot.lane.b32.xlu0 %v1851, 64
      %v1898 = vpop.permute.xlu0 %1897
      %1899 = vrot.lane.b32.xlu0 %v1852, 64
      %v1900 = vpop.permute.xlu0 %1899
      %v1917 = vadd.f32 %v1821, %v1870
      %v1918 = vadd.f32 %v1822, %v1872
      %v1919 = vadd.f32 %v1823, %v1874
      %v1920 = vadd.f32 %v1824, %v1876
      %v1921 = vadd.f32 %v1825, %v1878
      %v1922 = vadd.f32 %v1826, %v1880
      %v1923 = vadd.f32 %v1827, %v1882
      %v1924 = vadd.f32 %v1828, %v1884
      %v1925 = vadd.f32 %v1829, %v1886
      %v1926 = vadd.f32 %v1830, %v1888
      %v1927 = vadd.f32 %v1831, %v1890
      %v1928 = vadd.f32 %v1832, %v1892
      %v1929 = vadd.f32 %v1833, %v1894
      %v1930 = vadd.f32 %v1834, %v1896
      %v1931 = vadd.f32 %v1835, %v1898
      %v1932 = vadd.f32 %v1836, %v1900
      %v1933 = vtanh.pop %v1917
      %v1934 = vtanh.pop %v1918
      %v1935 = vtanh.pop %v1919
      %v1936 = vtanh.pop %v1920
      %v1937 = vtanh.pop %v1921
      %v1938 = vtanh.pop %v1922
      %v1939 = vtanh.pop %v1923
      %v1940 = vtanh.pop %v1924
      %v1941 = vtanh.pop %v1925
      %v1942 = vtanh.pop %v1926
      %v1943 = vtanh.pop %v1927
      %v1944 = vtanh.pop %v1928
      %v1945 = vtanh.pop %v1929
      %v1946 = vtanh.pop %v1930
      %v1947 = vtanh.pop %v1931
      %v1948 = vtanh.pop %v1932
      %v1949 = vmul.f32 %v1726, %v1933
      %v1950 = vmul.f32 %v1728, %v1934
      %v1951 = vmul.f32 %v1730, %v1935
      %v1952 = vmul.f32 %v1732, %v1936
      %v1953 = vmul.f32 %v1734, %v1937
      %v1954 = vmul.f32 %v1736, %v1938
      %v1955 = vmul.f32 %v1738, %v1939
      %v1956 = vmul.f32 %v1740, %v1940
      %v1957 = vmul.f32 %v1742, %v1941
      %v1958 = vmul.f32 %v1744, %v1942
      %v1959 = vmul.f32 %v1746, %v1943
      %v1960 = vmul.f32 %v1748, %v1944
      %v1961 = vmul.f32 %v1750, %v1945
      %v1962 = vmul.f32 %v1752, %v1946
      %v1963 = vmul.f32 %v1754, %v1947
      %v1964 = vmul.f32 %v1756, %v1948
      %v1965 = vpack.c.bf16 %v1950, %v1949
      %v1966 = vpack.c.bf16 %v1952, %v1951
      %v1967 = vpack.c.bf16 %v1954, %v1953
      %v1968 = vpack.c.bf16 %v1956, %v1955
      %v1969 = vpack.c.bf16 %v1958, %v1957
      %v1970 = vpack.c.bf16 %v1960, %v1959
      %v1971 = vpack.c.bf16 %v1962, %v1961
      %v1972 = vpack.c.bf16 %v1964, %v1963
      %v1973 = vld [vmem:[%s7] sm:$0xf]
      %v1974 = vld [vmem:[%s7 + $0x4] sm:$0xf]
      %v1975 = vld [vmem:[%s7 + $0x8] sm:$0xf]
      %v1976 = vld [vmem:[%s7 + $0xc] sm:$0xf]
      %v1977 = vld [vmem:[%s7 + $0x10] sm:$0xf]
      %v1978 = vld [vmem:[%s7 + $0x14] sm:$0xf]
      %v1979 = vld [vmem:[%s7 + $0x18] sm:$0xf]
      %v1980 = vld [vmem:[%s7 + $0x1c] sm:$0xf]
      %v1981 = vlaneseq
      %v1982 = vshrl.u32 %v1981, 7
      %v1983 = vsub.s32 2, %v1982
      %v1984 = vrot.slane %v466, %v1983
      %1993 = vrot.lane.b32.xlu0 %v1965, 64
      %v1994 = vpop.permute.xlu0 %1993
      %1995 = vrot.lane.b32.xlu0 %v1966, 64
      %v1996 = vpop.permute.xlu0 %1995
      %1997 = vrot.lane.b32.xlu0 %v1967, 64
      %v1998 = vpop.permute.xlu0 %1997
      %1999 = vrot.lane.b32.xlu0 %v1968, 64
      %v2000 = vpop.permute.xlu0 %1999
      %2001 = vrot.lane.b32.xlu0 %v1969, 64
      %v2002 = vpop.permute.xlu0 %2001
      %2003 = vrot.lane.b32.xlu0 %v1970, 64
      %v2004 = vpop.permute.xlu0 %2003
      %2005 = vrot.lane.b32.xlu0 %v1971, 64
      %v2006 = vpop.permute.xlu0 %2005
      %2007 = vrot.lane.b32.xlu0 %v1972, 64
      %v2008 = vpop.permute.xlu0 %2007
      %v2017 = vunpack.c.l.b16 %v1973
      %v2018 = vunpack.c.l.b16 %v1974
      %v2019 = vunpack.c.l.b16 %v1975
      %v2020 = vunpack.c.l.b16 %v1976
      %v2021 = vunpack.c.l.b16 %v1977
      %v2022 = vunpack.c.l.b16 %v1978
      %v2023 = vunpack.c.l.b16 %v1979
      %v2024 = vunpack.c.l.b16 %v1980
      %v2025 = vpack.c.b16 %v2018, %v2017
      %v2026 = vpack.c.b16 %v2020, %v2019
      %v2027 = vpack.c.b16 %v2022, %v2021
      %v2028 = vpack.c.b16 %v2024, %v2023
      %v2034 = vsel %vm604, %v1994, 0
      %v2037 = vsel %vm604, %v1996, 0
      %v2040 = vsel %vm604, %v1998, 0
      %v2043 = vsel %vm604, %v2000, 0
      %v2046 = vsel %vm604, %v2002, 0
      %v2049 = vsel %vm604, %v2004, 0
      %v2052 = vsel %vm604, %v2006, 0
      %v2055 = vsel %vm604, %v2008, 0
      %2057 = vmatprep.subr.bf16.mxu0 0
      %2058 = vmatpush1.bf16.msra.mxu0 0
      %2059 = vmatprep.subr.bf16.mxu0 0
      %2060 = vmatpush1.bf16.msra.mxu0 0
      %2061 = vmatprep.subr.bf16.mxu0 0
      %2062 = vmatpush1.bf16.msra.mxu0 0
      %2063 = vmatprep.subr.bf16.mxu0 0
      %2064 = vmatpush1.bf16.msra.mxu0 0
      %2065 = vmatprep.subr.bf16.mxu0 0
      %2066 = vmatpush1.bf16.msra.mxu0 %v2028
      %2067 = vmatprep.subr.bf16.mxu0 0
      %2068 = vmatpush1.bf16.msra.mxu0 %v2027
      %2069 = vmatprep.subr.bf16.mxu0 0
      %2070 = vmatpush1.bf16.msra.mxu0 %v2026
      %2071 = vmatprep.subr.bf16.mxu0 0
      %2072 = vmatpush1.bf16.msra.mxu0 %v2025
      %2073 = vmatprep.subr.bf16.mxu0 0
      %2074 = vmatpush2.bf16.msra.mxu0 0
      %2075 = vmatprep.subr.bf16.mxu0 0
      %2076 = vmatpush2.bf16.msra.mxu0 0
      %2077 = vmatprep.subr.bf16.mxu0 0
      %2078 = vmatpush2.bf16.msra.mxu0 0
      %2079 = vmatprep.subr.bf16.mxu0 0
      %2080 = vmatpush2.bf16.msra.mxu0 0
      %2081 = vmatprep.subr.bf16.mxu0 0
      %2082 = vmatpush2.bf16.msra.mxu0 0
      %2083 = vmatprep.subr.bf16.mxu0 0
      %2084 = vmatpush2.bf16.msra.mxu0 0
      %2085 = vmatprep.subr.bf16.mxu0 0
      %2086 = vmatpush2.bf16.msra.mxu0 0
      %2087 = vmatprep.subr.bf16.mxu0 0
      %2088 = vmatpush2.bf16.msra.mxu0 0
      %2089 = vmatprep.mubr.bf16.mxu0 0
      %2090 = vmatmul.mubr.bf16.gmra.mxu0 %v2034
      %v2091 = vpop.f32.mrf.mxu0
      %v2092 = vadd.f32 %v1984, %v2091
      %v2093 = vpop.f32.mrf.mxu0
      %v2094 = vpop.f32.mrf.mxu0
      %v2095 = vadd.f32 %v1984, %v2094
      %v2096 = vpop.f32.mrf.mxu0
      %2097 = vmatprep.mubr.bf16.mxu0 0
      %2098 = vmatmul.mubr.bf16.gmra.mxu0 %v2037
      %v2099 = vpop.f32.mrf.mxu0
      %v2100 = vadd.f32 %v1984, %v2099
      %v2101 = vpop.f32.mrf.mxu0
      %v2102 = vpop.f32.mrf.mxu0
      %v2103 = vadd.f32 %v1984, %v2102
      %v2104 = vpop.f32.mrf.mxu0
      %2105 = vmatprep.mubr.bf16.mxu0 0
      %2106 = vmatmul.mubr.bf16.gmra.mxu0 %v2040
      %v2107 = vpop.f32.mrf.mxu0
      %v2108 = vadd.f32 %v1984, %v2107
      %v2109 = vpop.f32.mrf.mxu0
      %v2110 = vpop.f32.mrf.mxu0
      %v2111 = vadd.f32 %v1984, %v2110
      %v2112 = vpop.f32.mrf.mxu0
      %2113 = vmatprep.mubr.bf16.mxu0 0
      %2114 = vmatmul.mubr.bf16.gmra.mxu0 %v2043
      %v2115 = vpop.f32.mrf.mxu0
      %v2116 = vadd.f32 %v1984, %v2115
      %v2117 = vpop.f32.mrf.mxu0
      %v2118 = vpop.f32.mrf.mxu0
      %v2119 = vadd.f32 %v1984, %v2118
      %v2120 = vpop.f32.mrf.mxu0
      %2121 = vmatprep.mubr.bf16.mxu0 0
      %2122 = vmatmul.mubr.bf16.gmra.mxu0 %v2046
      %v2123 = vpop.f32.mrf.mxu0
      %v2124 = vadd.f32 %v1984, %v2123
      %v2125 = vpop.f32.mrf.mxu0
      %v2126 = vpop.f32.mrf.mxu0
      %v2127 = vadd.f32 %v1984, %v2126
      %v2128 = vpop.f32.mrf.mxu0
      %2129 = vmatprep.mubr.bf16.mxu0 0
      %2130 = vmatmul.mubr.bf16.gmra.mxu0 %v2049
      %v2131 = vpop.f32.mrf.mxu0
      %v2132 = vadd.f32 %v1984, %v2131
      %v2133 = vpop.f32.mrf.mxu0
      %v2134 = vpop.f32.mrf.mxu0
      %v2135 = vadd.f32 %v1984, %v2134
      %v2136 = vpop.f32.mrf.mxu0
      %2137 = vmatprep.mubr.bf16.mxu0 0
      %2138 = vmatmul.mubr.bf16.gmra.mxu0 %v2052
      %v2139 = vpop.f32.mrf.mxu0
      %v2140 = vadd.f32 %v1984, %v2139
      %v2141 = vpop.f32.mrf.mxu0
      %v2142 = vpop.f32.mrf.mxu0
      %v2143 = vadd.f32 %v1984, %v2142
      %v2144 = vpop.f32.mrf.mxu0
      %2145 = vmatprep.mubr.bf16.mxu0 0
      %2146 = vmatmul.mubr.bf16.gmra.mxu0 %v2055
      %v2147 = vpop.f32.mrf.mxu0
      %v2148 = vadd.f32 %v1984, %v2147
      %v2149 = vpop.f32.mrf.mxu0
      %v2150 = vpop.f32.mrf.mxu0
      %v2151 = vadd.f32 %v1984, %v2150
      %v2152 = vpop.f32.mrf.mxu0
      %2153 = vdwg.mxu0
      %2154 = vst [vmem:[%s457] sm:$0xff] %v2092
      %2155 = vst [vmem:[%s457 + $0x8] sm:$0xff] %v2095
      %2156 = vst [vmem:[%s457 + $0x10] sm:$0xff] %v2100
      %2157 = vst [vmem:[%s457 + $0x18] sm:$0xff] %v2103
      %2158 = vst [vmem:[%s457 + $0x20] sm:$0xff] %v2108
      %2159 = vst [vmem:[%s457 + $0x28] sm:$0xff] %v2111
      %2160 = vst [vmem:[%s457 + $0x30] sm:$0xff] %v2116
      %2161 = vst [vmem:[%s457 + $0x38] sm:$0xff] %v2119
      %2162 = vst [vmem:[%s457 + $0x40] sm:$0xff] %v2124
      %2163 = vst [vmem:[%s457 + $0x48] sm:$0xff] %v2127
      %2164 = vst [vmem:[%s457 + $0x50] sm:$0xff] %v2132
      %2165 = vst [vmem:[%s457 + $0x58] sm:$0xff] %v2135
      %2166 = vst [vmem:[%s457 + $0x60] sm:$0xff] %v2140
      %2167 = vst [vmem:[%s457 + $0x68] sm:$0xff] %v2143
      %2168 = vst [vmem:[%s457 + $0x70] sm:$0xff] %v2148
      %2169 = vst [vmem:[%s457 + $0x78] sm:$0xff] %v2151
      %2186 = vrot.lane.b32.xlu0 %v1917, 64
      %v2187 = vpop.permute.xlu0 %2186
      %2188 = vrot.lane.b32.xlu0 %v1918, 64
      %v2189 = vpop.permute.xlu0 %2188
      %2190 = vrot.lane.b32.xlu0 %v1919, 64
      %v2191 = vpop.permute.xlu0 %2190
      %2192 = vrot.lane.b32.xlu0 %v1920, 64
      %v2193 = vpop.permute.xlu0 %2192
      %2194 = vrot.lane.b32.xlu0 %v1921, 64
      %v2195 = vpop.permute.xlu0 %2194
      %2196 = vrot.lane.b32.xlu0 %v1922, 64
      %v2197 = vpop.permute.xlu0 %2196
      %2198 = vrot.lane.b32.xlu0 %v1923, 64
      %v2199 = vpop.permute.xlu0 %2198
      %2200 = vrot.lane.b32.xlu0 %v1924, 64
      %v2201 = vpop.permute.xlu0 %2200
      %2202 = vrot.lane.b32.xlu0 %v1925, 64
      %v2203 = vpop.permute.xlu0 %2202
      %2204 = vrot.lane.b32.xlu0 %v1926, 64
      %v2205 = vpop.permute.xlu0 %2204
      %2206 = vrot.lane.b32.xlu0 %v1927, 64
      %v2207 = vpop.permute.xlu0 %2206
      %2208 = vrot.lane.b32.xlu0 %v1928, 64
      %v2209 = vpop.permute.xlu0 %2208
      %2210 = vrot.lane.b32.xlu0 %v1929, 64
      %v2211 = vpop.permute.xlu0 %2210
      %2212 = vrot.lane.b32.xlu0 %v1930, 64
      %v2213 = vpop.permute.xlu0 %2212
      %2214 = vrot.lane.b32.xlu0 %v1931, 64
      %v2215 = vpop.permute.xlu0 %2214
      %2216 = vrot.lane.b32.xlu0 %v1932, 64
      %v2217 = vpop.permute.xlu0 %2216
      %2234 = vst.msk [vmem:[%s463] sm:$0xff] %vm604, %v2187
      %2235 = vst.msk [vmem:[%s463 + $0x8] sm:$0xff] %vm604, %v2189
      %2236 = vst.msk [vmem:[%s463 + $0x10] sm:$0xff] %vm604, %v2191
      %2237 = vst.msk [vmem:[%s463 + $0x18] sm:$0xff] %vm604, %v2193
      %2238 = vst.msk [vmem:[%s463 + $0x20] sm:$0xff] %vm604, %v2195
      %2239 = vst.msk [vmem:[%s463 + $0x28] sm:$0xff] %vm604, %v2197
      %2240 = vst.msk [vmem:[%s463 + $0x30] sm:$0xff] %vm604, %v2199
      %2241 = vst.msk [vmem:[%s463 + $0x38] sm:$0xff] %vm604, %v2201
      %2242 = vst.msk [vmem:[%s463 + $0x40] sm:$0xff] %vm604, %v2203
      %2243 = vst.msk [vmem:[%s463 + $0x48] sm:$0xff] %vm604, %v2205
      %2244 = vst.msk [vmem:[%s463 + $0x50] sm:$0xff] %vm604, %v2207
      %2245 = vst.msk [vmem:[%s463 + $0x58] sm:$0xff] %vm604, %v2209
      %2246 = vst.msk [vmem:[%s463 + $0x60] sm:$0xff] %vm604, %v2211
      %2247 = vst.msk [vmem:[%s463 + $0x68] sm:$0xff] %vm604, %v2213
      %2248 = vst.msk [vmem:[%s463 + $0x70] sm:$0xff] %vm604, %v2215
      %2249 = vst.msk [vmem:[%s463 + $0x78] sm:$0xff] %vm604, %v2217
      %vm2250 = vcmask 1048064
      %2251 = vst.msk [vmem:[%s463] sm:$0xff] %vm2250, %v1949
      %2252 = vst.msk [vmem:[%s463 + $0x8] sm:$0xff] %vm2250, %v1950
      %2253 = vst.msk [vmem:[%s463 + $0x10] sm:$0xff] %vm2250, %v1951
      %2254 = vst.msk [vmem:[%s463 + $0x18] sm:$0xff] %vm2250, %v1952
      %2255 = vst.msk [vmem:[%s463 + $0x20] sm:$0xff] %vm2250, %v1953
      %2256 = vst.msk [vmem:[%s463 + $0x28] sm:$0xff] %vm2250, %v1954
      %2257 = vst.msk [vmem:[%s463 + $0x30] sm:$0xff] %vm2250, %v1955
      %2258 = vst.msk [vmem:[%s463 + $0x38] sm:$0xff] %vm2250, %v1956
      %2259 = vst.msk [vmem:[%s463 + $0x40] sm:$0xff] %vm2250, %v1957
      %2260 = vst.msk [vmem:[%s463 + $0x48] sm:$0xff] %vm2250, %v1958
      %2261 = vst.msk [vmem:[%s463 + $0x50] sm:$0xff] %vm2250, %v1959
      %2262 = vst.msk [vmem:[%s463 + $0x58] sm:$0xff] %vm2250, %v1960
      %2263 = vst.msk [vmem:[%s463 + $0x60] sm:$0xff] %vm2250, %v1961
      %2264 = vst.msk [vmem:[%s463 + $0x68] sm:$0xff] %vm2250, %v1962
      %2265 = vst.msk [vmem:[%s463 + $0x70] sm:$0xff] %vm2250, %v1963
      %2266 = vst.msk [vmem:[%s463 + $0x78] sm:$0xff] %vm2250, %v1964
      %s2267 = smul.u32 16, %s22
      %p2268 = scmp.lt.s32.totalorder %s2267, 31
      %s2269 = scalar_select %p2268, %s2267, 31
      %s2270 = smul.addr %s2269, 8
      %s2271 = scalar_lea.vmem %s9, %s2270
      %s2272 = smul.u32 16, %s22
      %p2273 = scmp.lt.s32.totalorder %s2272, 31
      %s2274 = scalar_select %p2273, %s2272, 31
      %s2275 = smul.addr %s2274, 8
      %s2276 = scalar_lea.vmem %s10, %s2275
      // Predicated region
      $region57: #{human_node_rnn_forward.1} parent=55 // pred_check
        %p2277 = pneg %p254
      $region58: #{human_node_rnn_forward.1} parent=55 // pred_check_branch
        %2279 = sbr.rel (%p2277) target = $region60
      $region59: #{human_node_rnn_forward.1} parent=55 // pred_region
        %s2280 = smul.u32 16, %s22
      $region60: #{human_node_rnn_forward.1} parent=55 // pred_fallthru
        _
      // Predicated region
      $region61: #{human_node_rnn_forward.1} parent=55 // pred_check
        %p2281 = pneg %p280
      $region62: #{human_node_rnn_forward.1} parent=55 // pred_check_branch
        %2283 = sbr.rel (%p2281) target = $region64
      $region63: #{human_node_rnn_forward.1} parent=55 // pred_region
        %s2284 = smul.u32 16, %s22
      $region64: #{human_node_rnn_forward.1} parent=55 // pred_fallthru
        _
    $region56: #{human_node_rnn_forward.1} parent=5 // pred_fallthru
      _
    %p2285 = scmp.le.s32.totalorder 2, %s17
    // Predicated region
    $region65: #{human_node_rnn_forward.1} parent=5 // pred_check
      %p2286 = pneg %p2285
    $region66: #{human_node_rnn_forward.1} parent=5 // pred_check_branch
      %2288 = sbr.rel (%p2286) target = $region68
    $region67: #{human_node_rnn_forward.1} parent=5 // pred_region
      %s2289 = ssub.s32 %s17, 2
      // Predicated region
      $region69: #{human_node_rnn_forward.1} parent=67 // pred_check
        %p2290 = pneg %p260
      $region70: #{human_node_rnn_forward.1} parent=67 // pred_check_branch
        %2292 = sbr.rel (%p2290) target = $region72
      $region71: #{human_node_rnn_forward.1} parent=67 // pred_region
        %s2293 = smul.u32 16, %s23
        %p2294 = scmp.lt.s32.totalorder %s2293, 31
        %s2295 = scalar_select %p2294, %s2293, 31
        %s2296 = smul.addr %s2295, 8
        %s2297 = scalar_lea.vmem %s9, %s2296
      $region72: #{human_node_rnn_forward.1} parent=67 // pred_fallthru
        _
      // Predicated region
      $region73: #{human_node_rnn_forward.1} parent=67 // pred_check
        %p2298 = pneg %p286
      $region74: #{human_node_rnn_forward.1} parent=67 // pred_check_branch
        %2300 = sbr.rel (%p2298) target = $region76
      $region75: #{human_node_rnn_forward.1} parent=67 // pred_region
        %s2301 = smul.u32 16, %s23
        %p2302 = scmp.lt.s32.totalorder %s2301, 31
        %s2303 = scalar_select %p2302, %s2301, 31
        %s2304 = smul.addr %s2303, 8
        %s2305 = scalar_lea.vmem %s10, %s2304
      $region76: #{human_node_rnn_forward.1} parent=67 // pred_fallthru
        _
    $region68: #{human_node_rnn_forward.1} parent=5 // pred_fallthru
      _
  $region6: #{human_node_rnn_forward.1} parent=0 // loop_footer
    %s21 = sadd.s32 1, %s17
  $region7: #{human_node_rnn_forward.1} parent=0 // loop_footer_branch
    %16 = sbr.rel target = $region3
  $region8: #{human_node_rnn_forward.1} parent=0 // loop_exit
    _

</llo_original>
